<compile_context>
chip_gen: v7x
topology: tpu7x:2x2x1
jax: 0.10.0
libtpu: 0.0.40
codegen_flags: <defaults>
</compile_context>

<pallas_src>
import jax
import jax.numpy as jnp
from jax.experimental import pallas as pl
from jax.experimental.pallas import tpu as pltpu


def _conv3x3_same(x, w_flat):
    """3x3 'same' conv of one (H, W, Cin) tile against flattened (9*Cin, Cout) weights.

    Zero-pads spatially by 1 in-register, builds the 3 dx-shifted planes once,
    concatenates the 9 taps along the lane (channel) axis (im2col) and issues a
    single fat-K MXU matmul (H*W, 9*Cin) x (9*Cin, Cout) with f32 accumulation.
    """
    H, W, Cin = x.shape
    dt = x.dtype

    # In-register zero padding (replaces wrapper-side jnp.pad).
    zrow = jnp.zeros((1, W, Cin), dt)
    xh = jnp.concatenate([zrow, x, zrow], axis=0)            # (H+2, W,   Cin)
    zcol = jnp.zeros((H + 2, 1, Cin), dt)
    xp = jnp.concatenate([zcol, xh, zcol], axis=1)           # (H+2, W+2, Cin)

    # dx-shifted planes built once each (W is the sublane axis).
    planes = [xp[:, dx:dx + W, :] for dx in range(3)]        # 3 x (H+2, W, Cin)

    # im2col: 9 taps stacked along the lane dim -> one K = 9*Cin matmul.
    taps = [planes[dx][dy:dy + H] for dy in range(3) for dx in range(3)]
    patches = jnp.concatenate(taps, axis=-1)                 # (H, W, 9*Cin)

    return jax.lax.dot_general(
        patches, w_flat,
        dimension_numbers=(((2,), (0,)), ((), ())),
        preferred_element_type=jnp.float32)                  # (H, W, Cout) f32


def t4_kernel(x_ref, w1_ref, b1_ref, w2_ref, b2_ref, o_ref):
    # x_ref : (1, H, W, C)  bf16  NHWC input tile (one batch element)
    # w1_ref: (9*C, O)      bf16  conv1 weights (HWIO taps flattened), BN1 scale folded
    # b1_ref: (1, O)        f32   BN1 folded bias
    # w2_ref: (9*O, O)      bf16  conv2 weights, BN2 scale folded
    # b2_ref: (1, O)        f32   BN2 folded bias
    # o_ref : (1, 1, O)     f32   globally average-pooled output
    H, W = x_ref.shape[1], x_ref.shape[2]
    inv_hw = 1.0 / float(H * W)

    x = x_ref[0]                                             # (H, W, C) bf16

    # Conv1 + BN1 (scale folded into weights) + ReLU; epilogue in f32.
    y1 = _conv3x3_same(x, w1_ref[...])                       # (H, W, O) f32
    y1 = jnp.maximum(y1 + b1_ref[0][None, None, :], 0.0)

    # Conv2 + BN2 (Identity activation); bf16 operands, f32 accumulation.
    y2 = _conv3x3_same(y1.astype(jnp.bfloat16), w2_ref[...]) # (H, W, O) f32

    # AdaptiveAvgPool2d(1): global mean over (H, W). Bias2 is per-channel, so
    # adding it after the mean is exact. Accumulator is ~2 vregs -> no scratch needed.
    s = jnp.sum(y2, axis=0)                                  # (W, O)
    s = jnp.sum(s, axis=0, keepdims=True)                    # (1, O)
    o_ref[0] = (s * inv_hw + b2_ref[...]).astype(o_ref.dtype)


def t4_pallas(x_nchw,
              w1_oihw, gamma1, beta1, mean1, var1,
              w2_oihw, gamma2, beta2, mean2, var2,
              eps=1e-5):
    """SRNet T4 forward (eval mode). Input NCHW, output (N, odim, 1, 1)."""
    N, C, H, W = x_nchw.shape
    O = w1_oihw.shape[0]

    # ---- parameter folding (tiny, plain JAX) -------------------------------
    scale1 = gamma1 / jnp.sqrt(var1 + eps)
    bias1 = (beta1 - mean1 * scale1).astype(jnp.float32).reshape(1, O)
    scale2 = gamma2 / jnp.sqrt(var2 + eps)
    bias2 = (beta2 - mean2 * scale2).astype(jnp.float32).reshape(1, O)

    # OIHW -> HWIO, fold BN scale into the output-channel axis, flatten the 3x3
    # taps to (9*Cin, Cout) in (dy, dx, c) order (matches the kernel), cast bf16.
    w1 = (jnp.transpose(w1_oihw, (2, 3, 1, 0)) * scale1[None, None, None, :])
    w1 = w1.astype(jnp.bfloat16).reshape(9 * C, O)
    w2 = (jnp.transpose(w2_oihw, (2, 3, 1, 0)) * scale2[None, None, None, :])
    w2 = w2.astype(jnp.bfloat16).reshape(9 * O, O)

    # NCHW -> NHWC (channels on lanes) + bf16 cast. Padding happens in-kernel.
    # TODO(synk): if the surrounding network stays NHWC end-to-end this transpose
    #             disappears; the PyTorch spec hands us NCHW so we convert once.
    x_nhwc = jnp.transpose(x_nchw, (0, 2, 3, 1)).astype(jnp.bfloat16)

    # Constant operands (weights/biases) are <2 KiB total, so default
    # double-buffering costs nothing; pl.Buffered(1) not needed here.
    pooled = pl.pallas_call(
        t4_kernel,
        out_shape=jax.ShapeDtypeStruct((N, 1, O), jnp.float32),
        grid_spec=pltpu.PrefetchScalarGridSpec(
            num_scalar_prefetch=0,
            grid=(N,),
            in_specs=[
                pl.BlockSpec((1, H, W, C), lambda n: (n, 0, 0, 0)),
                pl.BlockSpec((9 * C, O), lambda n: (0, 0)),
                pl.BlockSpec((1, O), lambda n: (0, 0)),
                pl.BlockSpec((9 * O, O), lambda n: (0, 0)),
                pl.BlockSpec((1, O), lambda n: (0, 0)),
            ],
            out_specs=pl.BlockSpec((1, 1, O), lambda n: (n, 0, 0)),
        ),
        compiler_params=pltpu.CompilerParams(
            dimension_semantics=("parallel",),
            vmem_limit_bytes=32 * 1024 * 1024,
        ),
    )(x_nhwc, w1, bias1, w2, bias2)

    return pooled.reshape(N, O, 1, 1)


def t4_reference(x_nchw, w1, g1, b1, m1, v1, w2, g2, b2, m2, v2, eps=1e-5):
    """Pure-JAX NCHW reference mirroring the PyTorch T4 module in eval mode.

    Operands are quantized to bf16 exactly as the Pallas kernel does, so the
    comparison isolates structural correctness (accumulation stays f32).
    """
    f32 = jnp.float32
    s1 = g1 / jnp.sqrt(v1 + eps)
    bb1 = b1 - m1 * s1
    s2 = g2 / jnp.sqrt(v2 + eps)
    bb2 = b2 - m2 * s2

    w1f = (w1 * s1[:, None, None, None]).astype(jnp.bfloat16).astype(f32)
    w2f = (w2 * s2[:, None, None, None]).astype(jnp.bfloat16).astype(f32)
    xq = x_nchw.astype(jnp.bfloat16).astype(f32)

    y = jax.lax.conv_general_dilated(
        xq, w1f, window_strides=(1, 1), padding=((1, 1), (1, 1)),
        dimension_numbers=("NCHW", "OIHW", "NCHW"),
        preferred_element_type=f32)
    y = jnp.maximum(y + bb1[None, :, None, None], 0.0)
    yq = y.astype(jnp.bfloat16).astype(f32)

    y2 = jax.lax.conv_general_dilated(
        yq, w2f, window_strides=(1, 1), padding=((1, 1), (1, 1)),
        dimension_numbers=("NCHW", "OIHW", "NCHW"),
        preferred_element_type=f32)
    y2 = y2 + bb2[None, :, None, None]
    return jnp.mean(y2, axis=(2, 3), keepdims=True)          # (N, O, 1, 1)


if __name__ == "__main__":
    key = jax.random.PRNGKey(0)
    keys = jax.random.split(key, 11)

    N, idim, odim, H, W = 2, 4, 8, 16, 16

    x = jax.random.normal(keys[0], (N, idim, H, W), dtype=jnp.float32)

    # Conv2d(idim, odim, 3, bias=False) + BatchNorm2d(odim) (layer 1, ReLU)
    w1 = jax.random.normal(keys[1], (odim, idim, 3, 3), dtype=jnp.float32) * 0.1
    g1 = 1.0 + 0.1 * jax.random.normal(keys[2], (odim,), dtype=jnp.float32)
    b1 = 0.1 * jax.random.normal(keys[3], (odim,), dtype=jnp.float32)
    m1 = 0.1 * jax.random.normal(keys[4], (odim,), dtype=jnp.float32)
    v1 = jnp.abs(jax.random.normal(keys[5], (odim,), dtype=jnp.float32)) + 0.5

    # Conv2d(odim, odim, 3, bias=False) + BatchNorm2d(odim) (layer 2, Identity)
    w2 = jax.random.normal(keys[6], (odim, odim, 3, 3), dtype=jnp.float32) * 0.1
    g2 = 1.0 + 0.1 * jax.random.normal(keys[7], (odim,), dtype=jnp.float32)
    b2 = 0.1 * jax.random.normal(keys[8], (odim,), dtype=jnp.float32)
    m2 = 0.1 * jax.random.normal(keys[9], (odim,), dtype=jnp.float32)
    v2 = jnp.abs(jax.random.normal(keys[10], (odim,), dtype=jnp.float32)) + 0.5

    out = t4_pallas(x, w1, g1, b1, m1, v1, w2, g2, b2, m2, v2)
    out = jax.block_until_ready(out)

    ref = t4_reference(x, w1, g1, b1, m1, v1, w2, g2, b2, m2, v2)
    ref = jax.block_until_ready(ref)

    assert out.shape == (N, odim, 1, 1), out.shape
    max_err = float(jnp.max(jnp.abs(out - ref)))
    assert jnp.allclose(out, ref, rtol=2e-3, atol=2e-3), max_err

    print("KERNEL_OK")
</pallas_src>

<mosaic_0001>
module attributes {stable_mosaic.version = 11 : i64} {
  func.func @t4_kernel(%arg0: i32, %arg1: memref<1x16x16x4xbf16, #tpu.memory_space<vmem>>, %arg2: memref<36x8xbf16, #tpu.memory_space<vmem>>, %arg3: memref<1x8xf32, #tpu.memory_space<vmem>>, %arg4: memref<72x8xbf16, #tpu.memory_space<vmem>>, %arg5: memref<1x8xf32, #tpu.memory_space<vmem>>, %arg6: memref<1x1x8xf32, #tpu.memory_space<vmem>>) attributes {dimension_semantics = [#tpu.dimension_semantics<parallel>], iteration_bounds = array<i64: 2>, scalar_prefetch = 0 : i64, scratch_operands = 0 : i64, tpu.core_type = #tpu.core_type<tc>, window_params = [{transform_indices = @transform_0, window_bounds = array<i64: 1, 16, 16, 4>}, {pipeline_mode = #tpu.pipeline_mode<synchronous>, transform_indices = @transform_1, window_bounds = array<i64: 36, 8>}, {pipeline_mode = #tpu.pipeline_mode<synchronous>, transform_indices = @transform_2, window_bounds = array<i64: 1, 8>}, {pipeline_mode = #tpu.pipeline_mode<synchronous>, transform_indices = @transform_3, window_bounds = array<i64: 72, 8>}, {pipeline_mode = #tpu.pipeline_mode<synchronous>, transform_indices = @transform_4, window_bounds = array<i64: 1, 8>}, {transform_indices = @transform_5, window_bounds = array<i64: 1, 1, 8>}]} {
    %c0 = arith.constant 0 : index
    %c0_0 = arith.constant 0 : index
    %c0_1 = arith.constant 0 : index
    %c0_2 = arith.constant 0 : index
    %0 = vector.load %arg1[%c0, %c0_0, %c0_1, %c0_2] : memref<1x16x16x4xbf16, #tpu.memory_space<vmem>>, vector<1x16x16x4xbf16>
    %1 = vector.shape_cast %0 : vector<1x16x16x4xbf16> to vector<16x16x4xbf16>
    %c0_3 = arith.constant 0 : index
    %c0_4 = arith.constant 0 : index
    %2 = vector.load %arg2[%c0_3, %c0_4] : memref<36x8xbf16, #tpu.memory_space<vmem>>, vector<36x8xbf16>
    %cst = arith.constant 0.000000e+00 : bf16
    %3 = vector.broadcast %cst : bf16 to vector<1x16x4xbf16>
    %4 = tpu.concatenate %3, %1, %3 in 0 : vector<1x16x4xbf16>, vector<16x16x4xbf16>, vector<1x16x4xbf16> -> vector<18x16x4xbf16>
    %cst_5 = arith.constant 0.000000e+00 : bf16
    %5 = vector.broadcast %cst_5 : bf16 to vector<18x1x4xbf16>
    %6 = tpu.concatenate %5, %4, %5 in 1 : vector<18x1x4xbf16>, vector<18x16x4xbf16>, vector<18x1x4xbf16> -> vector<18x18x4xbf16>
    %7 = vector.extract_strided_slice %6 {offsets = [0, 0, 0], sizes = [18, 16, 4], strides = [1, 1, 1]} : vector<18x18x4xbf16> to vector<18x16x4xbf16>
    %8 = vector.extract_strided_slice %6 {offsets = [0, 1, 0], sizes = [18, 16, 4], strides = [1, 1, 1]} : vector<18x18x4xbf16> to vector<18x16x4xbf16>
    %9 = vector.extract_strided_slice %6 {offsets = [0, 2, 0], sizes = [18, 16, 4], strides = [1, 1, 1]} : vector<18x18x4xbf16> to vector<18x16x4xbf16>
    %10 = vector.extract_strided_slice %7 {offsets = [0, 0, 0], sizes = [16, 16, 4], strides = [1, 1, 1]} : vector<18x16x4xbf16> to vector<16x16x4xbf16>
    %11 = vector.extract_strided_slice %8 {offsets = [0, 0, 0], sizes = [16, 16, 4], strides = [1, 1, 1]} : vector<18x16x4xbf16> to vector<16x16x4xbf16>
    %12 = vector.extract_strided_slice %9 {offsets = [0, 0, 0], sizes = [16, 16, 4], strides = [1, 1, 1]} : vector<18x16x4xbf16> to vector<16x16x4xbf16>
    %13 = vector.extract_strided_slice %7 {offsets = [1, 0, 0], sizes = [16, 16, 4], strides = [1, 1, 1]} : vector<18x16x4xbf16> to vector<16x16x4xbf16>
    %14 = vector.extract_strided_slice %8 {offsets = [1, 0, 0], sizes = [16, 16, 4], strides = [1, 1, 1]} : vector<18x16x4xbf16> to vector<16x16x4xbf16>
    %15 = vector.extract_strided_slice %9 {offsets = [1, 0, 0], sizes = [16, 16, 4], strides = [1, 1, 1]} : vector<18x16x4xbf16> to vector<16x16x4xbf16>
    %16 = vector.extract_strided_slice %7 {offsets = [2, 0, 0], sizes = [16, 16, 4], strides = [1, 1, 1]} : vector<18x16x4xbf16> to vector<16x16x4xbf16>
    %17 = vector.extract_strided_slice %8 {offsets = [2, 0, 0], sizes = [16, 16, 4], strides = [1, 1, 1]} : vector<18x16x4xbf16> to vector<16x16x4xbf16>
    %18 = vector.extract_strided_slice %9 {offsets = [2, 0, 0], sizes = [16, 16, 4], strides = [1, 1, 1]} : vector<18x16x4xbf16> to vector<16x16x4xbf16>
    %19 = tpu.concatenate %10, %11, %12, %13, %14, %15, %16, %17, %18 in 2 : vector<16x16x4xbf16>, vector<16x16x4xbf16>, vector<16x16x4xbf16>, vector<16x16x4xbf16>, vector<16x16x4xbf16>, vector<16x16x4xbf16>, vector<16x16x4xbf16>, vector<16x16x4xbf16>, vector<16x16x4xbf16> -> vector<16x16x36xbf16>
    %cst_6 = arith.constant dense<0.000000e+00> : vector<16x16x8xf32>
    %20 = tpu.matmul %19, %2, %cst_6 {dimension_numbers = #tpu.dot_dimension_numbers<[2], [0], [0, 1], [1], [0, 0, 0, 1, 1, 1], [], []>} : vector<16x16x36xbf16>, vector<36x8xbf16>, vector<16x16x8xf32> -> vector<16x16x8xf32>
    %c0_7 = arith.constant 0 : index
    %c0_8 = arith.constant 0 : index
    %21 = vector.load %arg3[%c0_7, %c0_8] : memref<1x8xf32, #tpu.memory_space<vmem>>, vector<1x8xf32>
    %22 = vector.shape_cast %21 : vector<1x8xf32> to vector<8xf32>
    %23 = vector.shape_cast %22 : vector<8xf32> to vector<1x1x8xf32>
    %24 = vector.broadcast %23 : vector<1x1x8xf32> to vector<16x16x8xf32>
    %25 = arith.addf %20, %24 : vector<16x16x8xf32>
    %cst_9 = arith.constant 0.000000e+00 : f32
    %26 = vector.broadcast %cst_9 : f32 to vector<16x16x8xf32>
    %27 = arith.maximumf %25, %26 : vector<16x16x8xf32>
    %28 = arith.truncf %27 : vector<16x16x8xf32> to vector<16x16x8xbf16>
    %c0_10 = arith.constant 0 : index
    %c0_11 = arith.constant 0 : index
    %29 = vector.load %arg4[%c0_10, %c0_11] : memref<72x8xbf16, #tpu.memory_space<vmem>>, vector<72x8xbf16>
    %cst_12 = arith.constant 0.000000e+00 : bf16
    %30 = vector.broadcast %cst_12 : bf16 to vector<1x16x8xbf16>
    %31 = tpu.concatenate %30, %28, %30 in 0 : vector<1x16x8xbf16>, vector<16x16x8xbf16>, vector<1x16x8xbf16> -> vector<18x16x8xbf16>
    %cst_13 = arith.constant 0.000000e+00 : bf16
    %32 = vector.broadcast %cst_13 : bf16 to vector<18x1x8xbf16>
    %33 = tpu.concatenate %32, %31, %32 in 1 : vector<18x1x8xbf16>, vector<18x16x8xbf16>, vector<18x1x8xbf16> -> vector<18x18x8xbf16>
    %34 = vector.extract_strided_slice %33 {offsets = [0, 0, 0], sizes = [18, 16, 8], strides = [1, 1, 1]} : vector<18x18x8xbf16> to vector<18x16x8xbf16>
    %35 = vector.extract_strided_slice %33 {offsets = [0, 1, 0], sizes = [18, 16, 8], strides = [1, 1, 1]} : vector<18x18x8xbf16> to vector<18x16x8xbf16>
    %36 = vector.extract_strided_slice %33 {offsets = [0, 2, 0], sizes = [18, 16, 8], strides = [1, 1, 1]} : vector<18x18x8xbf16> to vector<18x16x8xbf16>
    %37 = vector.extract_strided_slice %34 {offsets = [0, 0, 0], sizes = [16, 16, 8], strides = [1, 1, 1]} : vector<18x16x8xbf16> to vector<16x16x8xbf16>
    %38 = vector.extract_strided_slice %35 {offsets = [0, 0, 0], sizes = [16, 16, 8], strides = [1, 1, 1]} : vector<18x16x8xbf16> to vector<16x16x8xbf16>
    %39 = vector.extract_strided_slice %36 {offsets = [0, 0, 0], sizes = [16, 16, 8], strides = [1, 1, 1]} : vector<18x16x8xbf16> to vector<16x16x8xbf16>
    %40 = vector.extract_strided_slice %34 {offsets = [1, 0, 0], sizes = [16, 16, 8], strides = [1, 1, 1]} : vector<18x16x8xbf16> to vector<16x16x8xbf16>
    %41 = vector.extract_strided_slice %35 {offsets = [1, 0, 0], sizes = [16, 16, 8], strides = [1, 1, 1]} : vector<18x16x8xbf16> to vector<16x16x8xbf16>
    %42 = vector.extract_strided_slice %36 {offsets = [1, 0, 0], sizes = [16, 16, 8], strides = [1, 1, 1]} : vector<18x16x8xbf16> to vector<16x16x8xbf16>
    %43 = vector.extract_strided_slice %34 {offsets = [2, 0, 0], sizes = [16, 16, 8], strides = [1, 1, 1]} : vector<18x16x8xbf16> to vector<16x16x8xbf16>
    %44 = vector.extract_strided_slice %35 {offsets = [2, 0, 0], sizes = [16, 16, 8], strides = [1, 1, 1]} : vector<18x16x8xbf16> to vector<16x16x8xbf16>
    %45 = vector.extract_strided_slice %36 {offsets = [2, 0, 0], sizes = [16, 16, 8], strides = [1, 1, 1]} : vector<18x16x8xbf16> to vector<16x16x8xbf16>
    %46 = tpu.concatenate %37, %38, %39, %40, %41, %42, %43, %44, %45 in 2 : vector<16x16x8xbf16>, vector<16x16x8xbf16>, vector<16x16x8xbf16>, vector<16x16x8xbf16>, vector<16x16x8xbf16>, vector<16x16x8xbf16>, vector<16x16x8xbf16>, vector<16x16x8xbf16>, vector<16x16x8xbf16> -> vector<16x16x72xbf16>
    %cst_14 = arith.constant dense<0.000000e+00> : vector<16x16x8xf32>
    %47 = tpu.matmul %46, %29, %cst_14 {dimension_numbers = #tpu.dot_dimension_numbers<[2], [0], [0, 1], [1], [0, 0, 0, 1, 1, 1], [], []>} : vector<16x16x72xbf16>, vector<72x8xbf16>, vector<16x16x8xf32> -> vector<16x16x8xf32>
    %cst_15 = arith.constant dense<0.000000e+00> : vector<16x8xf32>
    %48 = vector.multi_reduction <add>, %47, %cst_15 [0] : vector<16x16x8xf32> to vector<16x8xf32>
    %cst_16 = arith.constant dense<0.000000e+00> : vector<8xf32>
    %49 = vector.multi_reduction <add>, %48, %cst_16 [0] : vector<16x8xf32> to vector<8xf32>
    %50 = vector.shape_cast %49 : vector<8xf32> to vector<1x8xf32>
    %cst_17 = arith.constant 3.906250e-03 : f32
    %51 = vector.broadcast %cst_17 : f32 to vector<1x8xf32>
    %52 = arith.mulf %50, %51 : vector<1x8xf32>
    %c0_18 = arith.constant 0 : index
    %c0_19 = arith.constant 0 : index
    %53 = vector.load %arg5[%c0_18, %c0_19] : memref<1x8xf32, #tpu.memory_space<vmem>>, vector<1x8xf32>
    %54 = arith.addf %52, %53 : vector<1x8xf32>
    %c0_20 = arith.constant 0 : index
    %c0_21 = arith.constant 0 : index
    %c0_22 = arith.constant 0 : index
    %55 = vector.load %arg6[%c0_20, %c0_21, %c0_22] : memref<1x1x8xf32, #tpu.memory_space<vmem>>, vector<1x1x8xf32>
    %56 = vector.shape_cast %55 : vector<1x1x8xf32> to vector<1x8xf32>
    %57 = vector.shape_cast %54 : vector<1x8xf32> to vector<1x1x8xf32>
    tpu.vector_store %arg6[%c0_20, %c0_21, %c0_22], %57 {strides = array<i32>} : memref<1x1x8xf32, #tpu.memory_space<vmem>>, vector<1x1x8xf32>,
    return
  }
  func.func @transform_0(%arg0: i32) -> (i32, i32, i32, i32) {
    %c0_i32 = arith.constant 0 : i32
    %c0_i32_0 = arith.constant 0 : i32
    %c0_i32_1 = arith.constant 0 : i32
    %c0_i32_2 = arith.constant 0 : i32
    return %arg0, %c0_i32, %c0_i32_0, %c0_i32_1 : i32, i32, i32, i32
  }
  func.func @transform_1(%arg0: i32) -> (i32, i32) {
    %c0_i32 = arith.constant 0 : i32
    %c0_i32_0 = arith.constant 0 : i32
    %c0_i32_1 = arith.constant 0 : i32
    return %c0_i32, %c0_i32_0 : i32, i32
  }
  func.func @transform_2(%arg0: i32) -> (i32, i32) {
    %c0_i32 = arith.constant 0 : i32
    %c0_i32_0 = arith.constant 0 : i32
    %c0_i32_1 = arith.constant 0 : i32
    return %c0_i32, %c0_i32_0 : i32, i32
  }
  func.func @transform_3(%arg0: i32) -> (i32, i32) {
    %c0_i32 = arith.constant 0 : i32
    %c0_i32_0 = arith.constant 0 : i32
    %c0_i32_1 = arith.constant 0 : i32
    return %c0_i32, %c0_i32_0 : i32, i32
  }
  func.func @transform_4(%arg0: i32) -> (i32, i32) {
    %c0_i32 = arith.constant 0 : i32
    %c0_i32_0 = arith.constant 0 : i32
    %c0_i32_1 = arith.constant 0 : i32
    return %c0_i32, %c0_i32_0 : i32, i32
  }
  func.func @transform_5(%arg0: i32) -> (i32, i32, i32) {
    %c0_i32 = arith.constant 0 : i32
    %c0_i32_0 = arith.constant 0 : i32
    %c0_i32_1 = arith.constant 0 : i32
    return %arg0, %c0_i32, %c0_i32_0 : i32, i32, i32
  }
}

</mosaic_0001>

<llo_original>
// kernel: tpu_custom_call.1
$region0: #{tpu_custom_call.1}
  #allocation0 [shape = 'u32[]', space=smem, size = 0x4, offset = 0x4, fixed_abs, tag = 'smem constant byte address 0x4 - core index']
  #allocation1 [shape = 'u32[144,128]{1,0:T(1,128)}', space=vmem, size = 0x12000, scoped, tag = 'internal scratch']
  %s0 = inlined_call_operand.vmem [shape: bf16[2,16,16,4], index: 0, kind: input, shape index: {}]
  %s1 = inlined_call_operand.vmem [shape: bf16[36,8], index: 1, kind: input, shape index: {}]
  %s2 = inlined_call_operand.vmem [shape: f32[1,8], index: 2, kind: input, shape index: {}]
  %s3 = inlined_call_operand.vmem [shape: bf16[72,8], index: 3, kind: input, shape index: {}]
  %s4 = inlined_call_operand.vmem [shape: f32[1,8], index: 4, kind: input, shape index: {}]
  %s5 = inlined_call_operand.hbm [shape: f32[2,1,8], index: 5, kind: output, shape index: {}]
  %s6 = sld [smem:[#allocation0]]
  $region53: #{tpu_custom_call.1} parent=0
    _
  %s8 = ssub.s32 1, %s6
  %s9 = scalar_select 0, %s8, %s6
  $region1: #{tpu_custom_call.1} parent=0
    #allocation2 [shape = 'u8[1024]{0}', space=vmem, size = 0x400, scoped, tag = 'output window, operand 0']
    #allocation3 [shape = 's32[2]{0}', space=sflag, size = 0x8, scoped, tag = 'scoped memory for tpu_custom_call.1']
    %10 = vsyncpa [#allocation3], 0
    %s11 = scalar_lea.sflag [#allocation3], 1
    %12 = vsyncpa %s11, 0
    loop: start=0, step=1, limit=4
    $region2: #{tpu_custom_call.1} parent=1 // loop_pre_header
      _
    $region3: #{tpu_custom_call.1} parent=1 // loop_header
      %s14 = sphi 0, %s18
      %p15 = scmp.ge.s32.totalorder %s14, 4
      %s24 = sphi 0, %s26
      %s27 = sphi 0, %s24
      %s28 = sphi 0, %s27
      %s44 = sphi 0, %s28
      %s48 = sphi 0, %s48
      %s50 = sphi 0, %s48
      %s51 = sphi 0, %s50
      %s65 = sphi 0, %s51
      %s69 = sphi 0, %s69
      %s71 = sphi 0, %s69
      %s72 = sphi 0, %s71
      %s86 = sphi 0, %s72
      %s90 = sphi 0, %s90
      %s92 = sphi 0, %s90
      %s93 = sphi 0, %s92
      %s107 = sphi 0, %s93
      %s111 = sphi 0, %s111
      %s113 = sphi 0, %s111
      %s114 = sphi 0, %s113
      %s128 = sphi 0, %s114
      %s134 = sphi 0, %s136
      %s137 = sphi 0, %s134
      %s138 = sphi 0, %s137
      %s154 = sphi 0, %s138
    $region4: #{tpu_custom_call.1} parent=1 // loop_header_branch
      %17 = sbr.rel (%p15) target = $region8
    $region5: #{tpu_custom_call.1} parent=1 // loop_body
      %s19 = ssub.s32 %s14, 1
      %s20 = ssub.s32 %s14, 2
      %s21 = sadd.s32 %s14, 1
      %s22 = ssub.s32 %s14, %s21
      %p23 = scmp.eq.s32.totalorder %s22, 0
      %s25 = sadd.s32 %s24, 1
      %s26 = scalar_select %p23, %s24, %s25
      %p29 = pneg %p23
      %p30 = scmp.eq.s32.totalorder %s14, 1
      %p31 = por %p29, %p30
      %p32 = scmp.ne.s32.totalorder %s24, %s27
      %p33 = scmp.eq.s32.totalorder %s14, 0
      %p34 = por %p32, %p33
      %p35 = scmp.ne.s32.totalorder %s24, %s27
      %p36 = scmp.eq.s32.totalorder %s19, 1
      %p37 = por %p35, %p36
      %p38 = scmp.ne.s32.totalorder %s27, %s28
      %p39 = scmp.eq.s32.totalorder %s19, 0
      %p40 = por %p38, %p39
      %p41 = scmp.ne.s32.totalorder %s27, %s28
      %p42 = scmp.eq.s32.totalorder %s20, 1
      %p43 = por %p41, %p42
      %p45 = scmp.ne.s32.totalorder %s28, %s44
      %p46 = scmp.eq.s32.totalorder %s20, 0
      %p47 = por %p45, %p46
      %s49 = sadd.s32 %s48, 1
      %p52 = scmp.eq.s32.totalorder %s14, 1
      %p53 = scmp.ne.s32.totalorder %s48, %s50
      %p54 = scmp.eq.s32.totalorder %s14, 0
      %p55 = por %p53, %p54
      %p56 = scmp.ne.s32.totalorder %s48, %s50
      %p57 = scmp.eq.s32.totalorder %s19, 1
      %p58 = por %p56, %p57
      %p59 = scmp.ne.s32.totalorder %s50, %s51
      %p60 = scmp.eq.s32.totalorder %s19, 0
      %p61 = por %p59, %p60
      %p62 = scmp.ne.s32.totalorder %s50, %s51
      %p63 = scmp.eq.s32.totalorder %s20, 1
      %p64 = por %p62, %p63
      %p66 = scmp.ne.s32.totalorder %s51, %s65
      %p67 = scmp.eq.s32.totalorder %s20, 0
      %p68 = por %p66, %p67
      %s70 = sadd.s32 %s69, 1
      %p73 = scmp.eq.s32.totalorder %s14, 1
      %p74 = scmp.ne.s32.totalorder %s69, %s71
      %p75 = scmp.eq.s32.totalorder %s14, 0
      %p76 = por %p74, %p75
      %p77 = scmp.ne.s32.totalorder %s69, %s71
      %p78 = scmp.eq.s32.totalorder %s19, 1
      %p79 = por %p77, %p78
      %p80 = scmp.ne.s32.totalorder %s71, %s72
      %p81 = scmp.eq.s32.totalorder %s19, 0
      %p82 = por %p80, %p81
      %p83 = scmp.ne.s32.totalorder %s71, %s72
      %p84 = scmp.eq.s32.totalorder %s20, 1
      %p85 = por %p83, %p84
      %p87 = scmp.ne.s32.totalorder %s72, %s86
      %p88 = scmp.eq.s32.totalorder %s20, 0
      %p89 = por %p87, %p88
      %s91 = sadd.s32 %s90, 1
      %p94 = scmp.eq.s32.totalorder %s14, 1
      %p95 = scmp.ne.s32.totalorder %s90, %s92
      %p96 = scmp.eq.s32.totalorder %s14, 0
      %p97 = por %p95, %p96
      %p98 = scmp.ne.s32.totalorder %s90, %s92
      %p99 = scmp.eq.s32.totalorder %s19, 1
      %p100 = por %p98, %p99
      %p101 = scmp.ne.s32.totalorder %s92, %s93
      %p102 = scmp.eq.s32.totalorder %s19, 0
      %p103 = por %p101, %p102
      %p104 = scmp.ne.s32.totalorder %s92, %s93
      %p105 = scmp.eq.s32.totalorder %s20, 1
      %p106 = por %p104, %p105
      %p108 = scmp.ne.s32.totalorder %s93, %s107
      %p109 = scmp.eq.s32.totalorder %s20, 0
      %p110 = por %p108, %p109
      %s112 = sadd.s32 %s111, 1
      %p115 = scmp.eq.s32.totalorder %s14, 1
      %p116 = scmp.ne.s32.totalorder %s111, %s113
      %p117 = scmp.eq.s32.totalorder %s14, 0
      %p118 = por %p116, %p117
      %p119 = scmp.ne.s32.totalorder %s111, %s113
      %p120 = scmp.eq.s32.totalorder %s19, 1
      %p121 = por %p119, %p120
      %p122 = scmp.ne.s32.totalorder %s113, %s114
      %p123 = scmp.eq.s32.totalorder %s19, 0
      %p124 = por %p122, %p123
      %p125 = scmp.ne.s32.totalorder %s113, %s114
      %p126 = scmp.eq.s32.totalorder %s20, 1
      %p127 = por %p125, %p126
      %p129 = scmp.ne.s32.totalorder %s114, %s128
      %p130 = scmp.eq.s32.totalorder %s20, 0
      %p131 = por %p129, %p130
      %s132 = ssub.s32 %s14, %s21
      %p133 = scmp.eq.s32.totalorder %s132, 0
      %s135 = sadd.s32 %s134, 1
      %s136 = scalar_select %p133, %s134, %s135
      %p139 = pneg %p133
      %p140 = scmp.eq.s32.totalorder %s14, 1
      %p141 = por %p139, %p140
      %p142 = scmp.ne.s32.totalorder %s134, %s137
      %p143 = scmp.eq.s32.totalorder %s14, 0
      %p144 = por %p142, %p143
      %p145 = scmp.ne.s32.totalorder %s134, %s137
      %p146 = scmp.eq.s32.totalorder %s19, 1
      %p147 = por %p145, %p146
      %p148 = scmp.ne.s32.totalorder %s137, %s138
      %p149 = scmp.eq.s32.totalorder %s19, 0
      %p150 = por %p148, %p149
      %p151 = scmp.ne.s32.totalorder %s137, %s138
      %p152 = scmp.eq.s32.totalorder %s20, 1
      %p153 = por %p151, %p152
      %p155 = scmp.ne.s32.totalorder %s138, %s154
      %p156 = scmp.eq.s32.totalorder %s20, 0
      %p157 = por %p155, %p156
      %p158 = scmp.le.s32.totalorder 1, %s14
      %p159 = scmp.lt.s32.totalorder %s14, 3
      %p160 = pnand %p158, %p159
      %p161 = pneg %p160
      // Predicated region
      $region9: #{tpu_custom_call.1} parent=5 // pred_check
        _
      $region10: #{tpu_custom_call.1} parent=5 // pred_check_branch
        %163 = sbr.rel (%p160) target = $region12
      $region11: #{tpu_custom_call.1} parent=5 // pred_region
        %s164 = ssub.s32 %s14, 1
        // Predicated region
        $region13: #{tpu_custom_call.1} parent=11 // pred_check
          %p165 = pneg %p61
        $region14: #{tpu_custom_call.1} parent=11 // pred_check_branch
          %167 = sbr.rel (%p165) target = $region16
        $region15: #{tpu_custom_call.1} parent=11 // pred_region
          _
        $region16: #{tpu_custom_call.1} parent=11 // pred_fallthru
          _
        // Predicated region
        $region17: #{tpu_custom_call.1} parent=11 // pred_check
          %p168 = pneg %p82
        $region18: #{tpu_custom_call.1} parent=11 // pred_check_branch
          %170 = sbr.rel (%p168) target = $region20
        $region19: #{tpu_custom_call.1} parent=11 // pred_region
          _
        $region20: #{tpu_custom_call.1} parent=11 // pred_fallthru
          _
        // Predicated region
        $region21: #{tpu_custom_call.1} parent=11 // pred_check
          %p171 = pneg %p103
        $region22: #{tpu_custom_call.1} parent=11 // pred_check_branch
          %173 = sbr.rel (%p171) target = $region24
        $region23: #{tpu_custom_call.1} parent=11 // pred_region
          _
        $region24: #{tpu_custom_call.1} parent=11 // pred_fallthru
          _
        // Predicated region
        $region25: #{tpu_custom_call.1} parent=11 // pred_check
          %p174 = pneg %p124
        $region26: #{tpu_custom_call.1} parent=11 // pred_check_branch
          %176 = sbr.rel (%p174) target = $region28
        $region27: #{tpu_custom_call.1} parent=11 // pred_region
          _
        $region28: #{tpu_custom_call.1} parent=11 // pred_fallthru
          _
      $region12: #{tpu_custom_call.1} parent=5 // pred_fallthru
        _
      %p177 = scmp.lt.s32.totalorder %s14, 2
      // Predicated region
      $region29: #{tpu_custom_call.1} parent=5 // pred_check
        %p178 = pneg %p177
      $region30: #{tpu_custom_call.1} parent=5 // pred_check_branch
        %180 = sbr.rel (%p178) target = $region32
      $region31: #{tpu_custom_call.1} parent=5 // pred_region
        // Predicated region
        $region33: #{tpu_custom_call.1} parent=31 // pred_check
          %p181 = pneg %p34
        $region34: #{tpu_custom_call.1} parent=31 // pred_check_branch
          %183 = sbr.rel (%p181) target = $region36
        $region35: #{tpu_custom_call.1} parent=31 // pred_region
          %p184 = scmp.lt.s32.totalorder %s14, 1
          %s185 = scalar_select %p184, %s14, 1
          %s186 = smul.addr %s185, 32
          %s187 = smul.addr %s186, 4
          %s188 = scalar_lea.vmem %s0, %s187
        $region36: #{tpu_custom_call.1} parent=31 // pred_fallthru
          _
      $region32: #{tpu_custom_call.1} parent=5 // pred_fallthru
        _
      %p189 = scmp.le.s32.totalorder 1, %s14
      %p190 = scmp.lt.s32.totalorder %s14, 3
      %p191 = pnand %p189, %p190
      %p192 = pneg %p191
      // Predicated region
      $region37: #{tpu_custom_call.1} parent=5 // pred_check
        _
      $region38: #{tpu_custom_call.1} parent=5 // pred_check_branch
        %194 = sbr.rel (%p191) target = $region40
      $region39: #{tpu_custom_call.1} parent=5 // pred_region
        %s195 = ssub.s32 %s14, 1
        %p196 = scmp.lt.s32.totalorder %s19, 1
        %s197 = scalar_select %p196, %s19, 1
        %s198 = smul.addr %s197, 32
        %s199 = smul.addr %s198, 4
        %s200 = scalar_lea.vmem %s0, %s199
        %p201 = pneg %p40
        %p202 = pneg %p37
        %p203 = pneg %p61
        %p204 = pneg %p58
        %p205 = pneg %p82
        %p206 = pneg %p79
        %p207 = pneg %p103
        %p208 = pneg %p100
        %p209 = pneg %p124
        %p210 = pneg %p121
        %p211 = pneg %p150
        %p212 = pneg %p147
        %s213 = sand.u32 %s137, 1
        %s214 = scalar_lea.sflag [#allocation3], %s213
        %s215 = sand.u32 %s137, 1
        %s216 = scalar_lea.vmem [#allocation2], %s215
        %p217 = scmp.lt.s32.totalorder %s19, 1
        %s218 = scalar_select %p217, %s19, 1
        %s219 = smul.addr %s218, 32
        %s220 = smul.addr %s219, 4
        %s221 = scalar_lea.vmem %s0, %s220
        %v223 = vld [vmem:[%s221] sm:$0xf]
        %v224 = vld [vmem:[%s221 + $0x4] sm:$0xf]
        %v225 = vld [vmem:[%s221 + $0x8] sm:$0xf]
        %v226 = vld [vmem:[%s221 + $0xc] sm:$0xf]
        %v227 = vld [vmem:[%s221 + $0x10] sm:$0xf]
        %v228 = vld [vmem:[%s221 + $0x14] sm:$0xf]
        %v229 = vld [vmem:[%s221 + $0x18] sm:$0xf]
        %v230 = vld [vmem:[%s221 + $0x1c] sm:$0xf]
        %v231 = vld [vmem:[%s221 + $0x20] sm:$0xf]
        %v232 = vld [vmem:[%s221 + $0x24] sm:$0xf]
        %v233 = vld [vmem:[%s221 + $0x28] sm:$0xf]
        %v234 = vld [vmem:[%s221 + $0x2c] sm:$0xf]
        %v235 = vld [vmem:[%s221 + $0x30] sm:$0xf]
        %v236 = vld [vmem:[%s221 + $0x34] sm:$0xf]
        %v237 = vld [vmem:[%s221 + $0x38] sm:$0xf]
        %v238 = vld [vmem:[%s221 + $0x3c] sm:$0xf]
        %v239 = vld [vmem:[%s221 + $0x40] sm:$0xf]
        %v240 = vld [vmem:[%s221 + $0x44] sm:$0xf]
        %v241 = vld [vmem:[%s221 + $0x48] sm:$0xf]
        %v242 = vld [vmem:[%s221 + $0x4c] sm:$0xf]
        %v243 = vld [vmem:[%s221 + $0x50] sm:$0xf]
        %v244 = vld [vmem:[%s221 + $0x54] sm:$0xf]
        %v245 = vld [vmem:[%s221 + $0x58] sm:$0xf]
        %v246 = vld [vmem:[%s221 + $0x5c] sm:$0xf]
        %v247 = vld [vmem:[%s221 + $0x60] sm:$0xf]
        %v248 = vld [vmem:[%s221 + $0x64] sm:$0xf]
        %v249 = vld [vmem:[%s221 + $0x68] sm:$0xf]
        %v250 = vld [vmem:[%s221 + $0x6c] sm:$0xf]
        %v251 = vld [vmem:[%s221 + $0x70] sm:$0xf]
        %v252 = vld [vmem:[%s221 + $0x74] sm:$0xf]
        %v253 = vld [vmem:[%s221 + $0x78] sm:$0xf]
        %v254 = vld [vmem:[%s221 + $0x7c] sm:$0xf]
        %v255 = vld [vmem:[%s1] sm:$0xf]
        %v256 = vld [vmem:[%s1 + $0x4] sm:$0xf]
        %v257 = vld [vmem:[%s1 + $0x8] sm:$0xf]
        %v258 = vld [vmem:[%s1 + $0xc] sm:$0xf]
        %v259 = vld [vmem:[%s1 + $0x10] sm:$0x3]
        %v292 = vunpack.c.l.b16 %v223
        %v293 = vunpack.c.l.b16 %v224
        %v294 = vunpack.c.l.b16 %v225
        %v295 = vunpack.c.l.b16 %v226
        %v296 = vunpack.c.l.b16 %v227
        %v297 = vunpack.c.l.b16 %v228
        %v298 = vunpack.c.l.b16 %v229
        %v299 = vunpack.c.l.b16 %v230
        %v300 = vunpack.c.l.b16 %v231
        %v301 = vunpack.c.l.b16 %v232
        %v302 = vunpack.c.l.b16 %v233
        %v303 = vunpack.c.l.b16 %v234
        %v304 = vunpack.c.l.b16 %v235
        %v305 = vunpack.c.l.b16 %v236
        %v306 = vunpack.c.l.b16 %v237
        %v307 = vunpack.c.l.b16 %v238
        %v308 = vunpack.c.l.b16 %v239
        %v309 = vunpack.c.l.b16 %v240
        %v310 = vunpack.c.l.b16 %v241
        %v311 = vunpack.c.l.b16 %v242
        %v312 = vunpack.c.l.b16 %v243
        %v313 = vunpack.c.l.b16 %v244
        %v314 = vunpack.c.l.b16 %v245
        %v315 = vunpack.c.l.b16 %v246
        %v316 = vunpack.c.l.b16 %v247
        %v317 = vunpack.c.l.b16 %v248
        %v318 = vunpack.c.l.b16 %v249
        %v319 = vunpack.c.l.b16 %v250
        %v320 = vunpack.c.l.b16 %v251
        %v321 = vunpack.c.l.b16 %v252
        %v322 = vunpack.c.l.b16 %v253
        %v323 = vunpack.c.l.b16 %v254
        %v324 = vpack.c.b16 %v293, %v292
        %v325 = vpack.c.b16 %v295, %v294
        %v326 = vpack.c.b16 %v297, %v296
        %v327 = vpack.c.b16 %v299, %v298
        %v328 = vpack.c.b16 %v301, %v300
        %v329 = vpack.c.b16 %v303, %v302
        %v330 = vpack.c.b16 %v305, %v304
        %v331 = vpack.c.b16 %v307, %v306
        %v332 = vpack.c.b16 %v309, %v308
        %v333 = vpack.c.b16 %v311, %v310
        %v334 = vpack.c.b16 %v313, %v312
        %v335 = vpack.c.b16 %v315, %v314
        %v336 = vpack.c.b16 %v317, %v316
        %v337 = vpack.c.b16 %v319, %v318
        %v338 = vpack.c.b16 %v321, %v320
        %v339 = vpack.c.b16 %v323, %v322
        %v341 = vshrl.u32 0, 16
        %v343 = vrot.slane %v341, 7
        %v344 = vshll.u32 0, 16
        %v346 = vor.u32 %v343, %v344
        %v348 = vshrl.u32 %v324, 16
        %v350 = vrot.slane %v348, 7
        %v351 = vshll.u32 %v324, 16
        %v353 = vor.u32 %v350, %v351
        %v355 = vshrl.u32 %v325, 16
        %v357 = vrot.slane %v355, 7
        %v358 = vshll.u32 %v325, 16
        %v360 = vor.u32 %v357, %v358
        %v362 = vshrl.u32 %v326, 16
        %v364 = vrot.slane %v362, 7
        %v365 = vshll.u32 %v326, 16
        %v367 = vor.u32 %v364, %v365
        %v369 = vshrl.u32 %v327, 16
        %v371 = vrot.slane %v369, 7
        %v372 = vshll.u32 %v327, 16
        %v374 = vor.u32 %v371, %v372
        %v376 = vshrl.u32 %v328, 16
        %v378 = vrot.slane %v376, 7
        %v379 = vshll.u32 %v328, 16
        %v381 = vor.u32 %v378, %v379
        %v383 = vshrl.u32 %v329, 16
        %v385 = vrot.slane %v383, 7
        %v386 = vshll.u32 %v329, 16
        %v388 = vor.u32 %v385, %v386
        %v390 = vshrl.u32 %v330, 16
        %v392 = vrot.slane %v390, 7
        %v393 = vshll.u32 %v330, 16
        %v395 = vor.u32 %v392, %v393
        %v397 = vshrl.u32 %v331, 16
        %v399 = vrot.slane %v397, 7
        %v400 = vshll.u32 %v331, 16
        %v402 = vor.u32 %v399, %v400
        %v404 = vshrl.u32 %v332, 16
        %v406 = vrot.slane %v404, 7
        %v407 = vshll.u32 %v332, 16
        %v409 = vor.u32 %v406, %v407
        %v411 = vshrl.u32 %v333, 16
        %v413 = vrot.slane %v411, 7
        %v414 = vshll.u32 %v333, 16
        %v416 = vor.u32 %v413, %v414
        %v418 = vshrl.u32 %v334, 16
        %v420 = vrot.slane %v418, 7
        %v421 = vshll.u32 %v334, 16
        %v423 = vor.u32 %v420, %v421
        %v425 = vshrl.u32 %v335, 16
        %v427 = vrot.slane %v425, 7
        %v428 = vshll.u32 %v335, 16
        %v430 = vor.u32 %v427, %v428
        %v432 = vshrl.u32 %v336, 16
        %v434 = vrot.slane %v432, 7
        %v435 = vshll.u32 %v336, 16
        %v437 = vor.u32 %v434, %v435
        %v439 = vshrl.u32 %v337, 16
        %v441 = vrot.slane %v439, 7
        %v442 = vshll.u32 %v337, 16
        %v444 = vor.u32 %v441, %v442
        %v446 = vshrl.u32 %v338, 16
        %v448 = vrot.slane %v446, 7
        %v449 = vshll.u32 %v338, 16
        %v451 = vor.u32 %v448, %v449
        %v453 = vshrl.u32 %v339, 16
        %v455 = vrot.slane %v453, 7
        %v456 = vshll.u32 %v339, 16
        %v458 = vor.u32 %v455, %v456
        %vm493 = vcmask 1040384
        %vm494 = vsmask.f32 256
        %vm495 = vmand %vm493, %vm494
        %v496 = vsel %vm495, 0, %v346
        %v497 = vsel %vm495, 0, %v353
        %v498 = vsel %vm495, 0, %v360
        %v499 = vsel %vm495, 0, %v367
        %v500 = vsel %vm495, 0, %v374
        %v501 = vsel %vm495, 0, %v381
        %v502 = vsel %vm495, 0, %v388
        %v503 = vsel %vm495, 0, %v395
        %v504 = vsel %vm495, 0, %v402
        %v505 = vsel %vm495, 0, %v409
        %v506 = vsel %vm495, 0, %v416
        %v507 = vsel %vm495, 0, %v423
        %v508 = vsel %vm495, 0, %v430
        %v509 = vsel %vm495, 0, %v437
        %v510 = vsel %vm495, 0, %v444
        %v511 = vsel %vm495, 0, %v451
        %v512 = vsel %vm495, 0, %v458
        %v513 = vsel %vm495, %v343, 0
        %v514 = vsel %vm495, %v350, 0
        %v515 = vsel %vm495, %v357, 0
        %v516 = vsel %vm495, %v364, 0
        %v517 = vsel %vm495, %v371, 0
        %v518 = vsel %vm495, %v378, 0
        %v519 = vsel %vm495, %v385, 0
        %v520 = vsel %vm495, %v392, 0
        %v521 = vsel %vm495, %v399, 0
        %v522 = vsel %vm495, %v406, 0
        %v523 = vsel %vm495, %v413, 0
        %v524 = vsel %vm495, %v420, 0
        %v525 = vsel %vm495, %v427, 0
        %v526 = vsel %vm495, %v434, 0
        %v527 = vsel %vm495, %v441, 0
        %v528 = vsel %vm495, %v448, 0
        %v529 = vsel %vm495, %v455, 0
        %vm530 = vsmask.f32 7424
        %v532 = vshrl.u32 %v496, 16
        %v534 = vshll.u32 %v496, 16
        %v536 = vrot.slane %v534, 1
        %v537 = vor.u32 %v532, %v536
        %v539 = vshll.u32 %v513, 16
        %v541 = vrot.slane %v539, 1
        %v542 = vsel %vm530, %v537, %v541
        %v544 = vshrl.u32 %v497, 16
        %v546 = vshll.u32 %v497, 16
        %v548 = vrot.slane %v546, 1
        %v549 = vor.u32 %v544, %v548
        %v551 = vshll.u32 %v514, 16
        %v553 = vrot.slane %v551, 1
        %v554 = vsel %vm530, %v549, %v553
        %v556 = vshrl.u32 %v498, 16
        %v558 = vshll.u32 %v498, 16
        %v560 = vrot.slane %v558, 1
        %v561 = vor.u32 %v556, %v560
        %v563 = vshll.u32 %v515, 16
        %v565 = vrot.slane %v563, 1
        %v566 = vsel %vm530, %v561, %v565
        %v568 = vshrl.u32 %v499, 16
        %v570 = vshll.u32 %v499, 16
        %v572 = vrot.slane %v570, 1
        %v573 = vor.u32 %v568, %v572
        %v575 = vshll.u32 %v516, 16
        %v577 = vrot.slane %v575, 1
        %v578 = vsel %vm530, %v573, %v577
        %v580 = vshrl.u32 %v500, 16
        %v582 = vshll.u32 %v500, 16
        %v584 = vrot.slane %v582, 1
        %v585 = vor.u32 %v580, %v584
        %v587 = vshll.u32 %v517, 16
        %v589 = vrot.slane %v587, 1
        %v590 = vsel %vm530, %v585, %v589
        %v592 = vshrl.u32 %v501, 16
        %v594 = vshll.u32 %v501, 16
        %v596 = vrot.slane %v594, 1
        %v597 = vor.u32 %v592, %v596
        %v599 = vshll.u32 %v518, 16
        %v601 = vrot.slane %v599, 1
        %v602 = vsel %vm530, %v597, %v601
        %v604 = vshrl.u32 %v502, 16
        %v606 = vshll.u32 %v502, 16
        %v608 = vrot.slane %v606, 1
        %v609 = vor.u32 %v604, %v608
        %v611 = vshll.u32 %v519, 16
        %v613 = vrot.slane %v611, 1
        %v614 = vsel %vm530, %v609, %v613
        %v616 = vshrl.u32 %v503, 16
        %v618 = vshll.u32 %v503, 16
        %v620 = vrot.slane %v618, 1
        %v621 = vor.u32 %v616, %v620
        %v623 = vshll.u32 %v520, 16
        %v625 = vrot.slane %v623, 1
        %v626 = vsel %vm530, %v621, %v625
        %v628 = vshrl.u32 %v504, 16
        %v630 = vshll.u32 %v504, 16
        %v632 = vrot.slane %v630, 1
        %v633 = vor.u32 %v628, %v632
        %v635 = vshll.u32 %v521, 16
        %v637 = vrot.slane %v635, 1
        %v638 = vsel %vm530, %v633, %v637
        %v640 = vshrl.u32 %v505, 16
        %v642 = vshll.u32 %v505, 16
        %v644 = vrot.slane %v642, 1
        %v645 = vor.u32 %v640, %v644
        %v647 = vshll.u32 %v522, 16
        %v649 = vrot.slane %v647, 1
        %v650 = vsel %vm530, %v645, %v649
        %v652 = vshrl.u32 %v506, 16
        %v654 = vshll.u32 %v506, 16
        %v656 = vrot.slane %v654, 1
        %v657 = vor.u32 %v652, %v656
        %v659 = vshll.u32 %v523, 16
        %v661 = vrot.slane %v659, 1
        %v662 = vsel %vm530, %v657, %v661
        %v664 = vshrl.u32 %v507, 16
        %v666 = vshll.u32 %v507, 16
        %v668 = vrot.slane %v666, 1
        %v669 = vor.u32 %v664, %v668
        %v671 = vshll.u32 %v524, 16
        %v673 = vrot.slane %v671, 1
        %v674 = vsel %vm530, %v669, %v673
        %v676 = vshrl.u32 %v508, 16
        %v678 = vshll.u32 %v508, 16
        %v680 = vrot.slane %v678, 1
        %v681 = vor.u32 %v676, %v680
        %v683 = vshll.u32 %v525, 16
        %v685 = vrot.slane %v683, 1
        %v686 = vsel %vm530, %v681, %v685
        %v688 = vshrl.u32 %v509, 16
        %v690 = vshll.u32 %v509, 16
        %v692 = vrot.slane %v690, 1
        %v693 = vor.u32 %v688, %v692
        %v695 = vshll.u32 %v526, 16
        %v697 = vrot.slane %v695, 1
        %v698 = vsel %vm530, %v693, %v697
        %v700 = vshrl.u32 %v510, 16
        %v702 = vshll.u32 %v510, 16
        %v704 = vrot.slane %v702, 1
        %v705 = vor.u32 %v700, %v704
        %v707 = vshll.u32 %v527, 16
        %v709 = vrot.slane %v707, 1
        %v710 = vsel %vm530, %v705, %v709
        %v712 = vshrl.u32 %v511, 16
        %v714 = vshll.u32 %v511, 16
        %v716 = vrot.slane %v714, 1
        %v717 = vor.u32 %v712, %v716
        %v719 = vshll.u32 %v528, 16
        %v721 = vrot.slane %v719, 1
        %v722 = vsel %vm530, %v717, %v721
        %723 = vrot.lane.b32.xlu0 %v542, 4
        %v724 = vpop.permute.xlu0 %723
        %725 = vrot.lane.b32.xlu0 %v554, 4
        %v726 = vpop.permute.xlu0 %725
        %727 = vrot.lane.b32.xlu0 %v566, 4
        %v728 = vpop.permute.xlu0 %727
        %729 = vrot.lane.b32.xlu0 %v578, 4
        %v730 = vpop.permute.xlu0 %729
        %731 = vrot.lane.b32.xlu0 %v590, 4
        %v732 = vpop.permute.xlu0 %731
        %733 = vrot.lane.b32.xlu0 %v602, 4
        %v734 = vpop.permute.xlu0 %733
        %735 = vrot.lane.b32.xlu0 %v614, 4
        %v736 = vpop.permute.xlu0 %735
        %737 = vrot.lane.b32.xlu0 %v626, 4
        %v738 = vpop.permute.xlu0 %737
        %739 = vrot.lane.b32.xlu0 %v638, 4
        %v740 = vpop.permute.xlu0 %739
        %741 = vrot.lane.b32.xlu0 %v650, 4
        %v742 = vpop.permute.xlu0 %741
        %743 = vrot.lane.b32.xlu0 %v662, 4
        %v744 = vpop.permute.xlu0 %743
        %745 = vrot.lane.b32.xlu0 %v674, 4
        %v746 = vpop.permute.xlu0 %745
        %747 = vrot.lane.b32.xlu0 %v686, 4
        %v748 = vpop.permute.xlu0 %747
        %749 = vrot.lane.b32.xlu0 %v698, 4
        %v750 = vpop.permute.xlu0 %749
        %751 = vrot.lane.b32.xlu0 %v710, 4
        %v752 = vpop.permute.xlu0 %751
        %753 = vrot.lane.b32.xlu0 %v722, 4
        %v754 = vpop.permute.xlu0 %753
        %vm787 = vcmask 1046528
        %v788 = vrot.slane %v496, 1
        %v789 = vrot.slane %v513, 1
        %v790 = vsel %vm787, %v788, %v789
        %v791 = vrot.slane %v497, 1
        %v792 = vrot.slane %v514, 1
        %v793 = vsel %vm787, %v791, %v792
        %v794 = vrot.slane %v498, 1
        %v795 = vrot.slane %v515, 1
        %v796 = vsel %vm787, %v794, %v795
        %v797 = vrot.slane %v499, 1
        %v798 = vrot.slane %v516, 1
        %v799 = vsel %vm787, %v797, %v798
        %v800 = vrot.slane %v500, 1
        %v801 = vrot.slane %v517, 1
        %v802 = vsel %vm787, %v800, %v801
        %v803 = vrot.slane %v501, 1
        %v804 = vrot.slane %v518, 1
        %v805 = vsel %vm787, %v803, %v804
        %v806 = vrot.slane %v502, 1
        %v807 = vrot.slane %v519, 1
        %v808 = vsel %vm787, %v806, %v807
        %v809 = vrot.slane %v503, 1
        %v810 = vrot.slane %v520, 1
        %v811 = vsel %vm787, %v809, %v810
        %v812 = vrot.slane %v504, 1
        %v813 = vrot.slane %v521, 1
        %v814 = vsel %vm787, %v812, %v813
        %v815 = vrot.slane %v505, 1
        %v816 = vrot.slane %v522, 1
        %v817 = vsel %vm787, %v815, %v816
        %v818 = vrot.slane %v506, 1
        %v819 = vrot.slane %v523, 1
        %v820 = vsel %vm787, %v818, %v819
        %v821 = vrot.slane %v507, 1
        %v822 = vrot.slane %v524, 1
        %v823 = vsel %vm787, %v821, %v822
        %v824 = vrot.slane %v508, 1
        %v825 = vrot.slane %v525, 1
        %v826 = vsel %vm787, %v824, %v825
        %v827 = vrot.slane %v509, 1
        %v828 = vrot.slane %v526, 1
        %v829 = vsel %vm787, %v827, %v828
        %v830 = vrot.slane %v510, 1
        %v831 = vrot.slane %v527, 1
        %v832 = vsel %vm787, %v830, %v831
        %v833 = vrot.slane %v511, 1
        %v834 = vrot.slane %v528, 1
        %v835 = vsel %vm787, %v833, %v834
        %836 = vrot.lane.b32.xlu0 %v790, 8
        %v837 = vpop.permute.xlu0 %836
        %838 = vrot.lane.b32.xlu0 %v793, 8
        %v839 = vpop.permute.xlu0 %838
        %840 = vrot.lane.b32.xlu0 %v796, 8
        %v841 = vpop.permute.xlu0 %840
        %842 = vrot.lane.b32.xlu0 %v799, 8
        %v843 = vpop.permute.xlu0 %842
        %844 = vrot.lane.b32.xlu0 %v802, 8
        %v845 = vpop.permute.xlu0 %844
        %846 = vrot.lane.b32.xlu0 %v805, 8
        %v847 = vpop.permute.xlu0 %846
        %848 = vrot.lane.b32.xlu0 %v808, 8
        %v849 = vpop.permute.xlu0 %848
        %850 = vrot.lane.b32.xlu0 %v811, 8
        %v851 = vpop.permute.xlu0 %850
        %852 = vrot.lane.b32.xlu0 %v814, 8
        %v853 = vpop.permute.xlu0 %852
        %854 = vrot.lane.b32.xlu0 %v817, 8
        %v855 = vpop.permute.xlu0 %854
        %856 = vrot.lane.b32.xlu0 %v820, 8
        %v857 = vpop.permute.xlu0 %856
        %858 = vrot.lane.b32.xlu0 %v823, 8
        %v859 = vpop.permute.xlu0 %858
        %860 = vrot.lane.b32.xlu0 %v826, 8
        %v861 = vpop.permute.xlu0 %860
        %862 = vrot.lane.b32.xlu0 %v829, 8
        %v863 = vpop.permute.xlu0 %862
        %864 = vrot.lane.b32.xlu0 %v832, 8
        %v865 = vpop.permute.xlu0 %864
        %866 = vrot.lane.b32.xlu0 %v835, 8
        %v867 = vpop.permute.xlu0 %866
        %869 = vrot.lane.b32.xlu0 %v497, 12
        %v870 = vpop.permute.xlu0 %869
        %871 = vrot.lane.b32.xlu0 %v498, 12
        %v872 = vpop.permute.xlu0 %871
        %873 = vrot.lane.b32.xlu0 %v499, 12
        %v874 = vpop.permute.xlu0 %873
        %875 = vrot.lane.b32.xlu0 %v500, 12
        %v876 = vpop.permute.xlu0 %875
        %877 = vrot.lane.b32.xlu0 %v501, 12
        %v878 = vpop.permute.xlu0 %877
        %879 = vrot.lane.b32.xlu0 %v502, 12
        %v880 = vpop.permute.xlu0 %879
        %881 = vrot.lane.b32.xlu0 %v503, 12
        %v882 = vpop.permute.xlu0 %881
        %883 = vrot.lane.b32.xlu0 %v504, 12
        %v884 = vpop.permute.xlu0 %883
        %885 = vrot.lane.b32.xlu0 %v505, 12
        %v886 = vpop.permute.xlu0 %885
        %887 = vrot.lane.b32.xlu0 %v506, 12
        %v888 = vpop.permute.xlu0 %887
        %889 = vrot.lane.b32.xlu0 %v507, 12
        %v890 = vpop.permute.xlu0 %889
        %891 = vrot.lane.b32.xlu0 %v508, 12
        %v892 = vpop.permute.xlu0 %891
        %893 = vrot.lane.b32.xlu0 %v509, 12
        %v894 = vpop.permute.xlu0 %893
        %895 = vrot.lane.b32.xlu0 %v510, 12
        %v896 = vpop.permute.xlu0 %895
        %897 = vrot.lane.b32.xlu0 %v511, 12
        %v898 = vpop.permute.xlu0 %897
        %899 = vrot.lane.b32.xlu0 %v512, 12
        %v900 = vpop.permute.xlu0 %899
        %v902 = vshrl.u32 %v512, 16
        %v904 = vshll.u32 %v512, 16
        %v906 = vrot.slane %v904, 1
        %v907 = vor.u32 %v902, %v906
        %v909 = vshll.u32 %v529, 16
        %v911 = vrot.slane %v909, 1
        %v912 = vsel %vm530, %v907, %v911
        %913 = vrot.lane.b32.xlu0 %v554, 16
        %v914 = vpop.permute.xlu0 %913
        %915 = vrot.lane.b32.xlu0 %v566, 16
        %v916 = vpop.permute.xlu0 %915
        %917 = vrot.lane.b32.xlu0 %v578, 16
        %v918 = vpop.permute.xlu0 %917
        %919 = vrot.lane.b32.xlu0 %v590, 16
        %v920 = vpop.permute.xlu0 %919
        %921 = vrot.lane.b32.xlu0 %v602, 16
        %v922 = vpop.permute.xlu0 %921
        %923 = vrot.lane.b32.xlu0 %v614, 16
        %v924 = vpop.permute.xlu0 %923
        %925 = vrot.lane.b32.xlu0 %v626, 16
        %v926 = vpop.permute.xlu0 %925
        %927 = vrot.lane.b32.xlu0 %v638, 16
        %v928 = vpop.permute.xlu0 %927
        %929 = vrot.lane.b32.xlu0 %v650, 16
        %v930 = vpop.permute.xlu0 %929
        %931 = vrot.lane.b32.xlu0 %v662, 16
        %v932 = vpop.permute.xlu0 %931
        %933 = vrot.lane.b32.xlu0 %v674, 16
        %v934 = vpop.permute.xlu0 %933
        %935 = vrot.lane.b32.xlu0 %v686, 16
        %v936 = vpop.permute.xlu0 %935
        %937 = vrot.lane.b32.xlu0 %v698, 16
        %v938 = vpop.permute.xlu0 %937
        %939 = vrot.lane.b32.xlu0 %v710, 16
        %v940 = vpop.permute.xlu0 %939
        %941 = vrot.lane.b32.xlu0 %v722, 16
        %v942 = vpop.permute.xlu0 %941
        %943 = vrot.lane.b32.xlu0 %v912, 16
        %v944 = vpop.permute.xlu0 %943
        %v946 = vrot.slane %v512, 1
        %v947 = vrot.slane %v529, 1
        %v948 = vsel %vm787, %v946, %v947
        %949 = vrot.lane.b32.xlu0 %v793, 20
        %v950 = vpop.permute.xlu0 %949
        %951 = vrot.lane.b32.xlu0 %v796, 20
        %v952 = vpop.permute.xlu0 %951
        %953 = vrot.lane.b32.xlu0 %v799, 20
        %v954 = vpop.permute.xlu0 %953
        %955 = vrot.lane.b32.xlu0 %v802, 20
        %v956 = vpop.permute.xlu0 %955
        %957 = vrot.lane.b32.xlu0 %v805, 20
        %v958 = vpop.permute.xlu0 %957
        %959 = vrot.lane.b32.xlu0 %v808, 20
        %v960 = vpop.permute.xlu0 %959
        %961 = vrot.lane.b32.xlu0 %v811, 20
        %v962 = vpop.permute.xlu0 %961
        %963 = vrot.lane.b32.xlu0 %v814, 20
        %v964 = vpop.permute.xlu0 %963
        %965 = vrot.lane.b32.xlu0 %v817, 20
        %v966 = vpop.permute.xlu0 %965
        %967 = vrot.lane.b32.xlu0 %v820, 20
        %v968 = vpop.permute.xlu0 %967
        %969 = vrot.lane.b32.xlu0 %v823, 20
        %v970 = vpop.permute.xlu0 %969
        %971 = vrot.lane.b32.xlu0 %v826, 20
        %v972 = vpop.permute.xlu0 %971
        %973 = vrot.lane.b32.xlu0 %v829, 20
        %v974 = vpop.permute.xlu0 %973
        %975 = vrot.lane.b32.xlu0 %v832, 20
        %v976 = vpop.permute.xlu0 %975
        %977 = vrot.lane.b32.xlu0 %v835, 20
        %v978 = vpop.permute.xlu0 %977
        %979 = vrot.lane.b32.xlu0 %v948, 20
        %v980 = vpop.permute.xlu0 %979
        %981 = vrot.lane.b32.xlu0 %v498, 24
        %v982 = vpop.permute.xlu0 %981
        %983 = vrot.lane.b32.xlu0 %v499, 24
        %v984 = vpop.permute.xlu0 %983
        %985 = vrot.lane.b32.xlu0 %v500, 24
        %v986 = vpop.permute.xlu0 %985
        %987 = vrot.lane.b32.xlu0 %v501, 24
        %v988 = vpop.permute.xlu0 %987
        %989 = vrot.lane.b32.xlu0 %v502, 24
        %v990 = vpop.permute.xlu0 %989
        %991 = vrot.lane.b32.xlu0 %v503, 24
        %v992 = vpop.permute.xlu0 %991
        %993 = vrot.lane.b32.xlu0 %v504, 24
        %v994 = vpop.permute.xlu0 %993
        %995 = vrot.lane.b32.xlu0 %v505, 24
        %v996 = vpop.permute.xlu0 %995
        %997 = vrot.lane.b32.xlu0 %v506, 24
        %v998 = vpop.permute.xlu0 %997
        %999 = vrot.lane.b32.xlu0 %v507, 24
        %v1000 = vpop.permute.xlu0 %999
        %1001 = vrot.lane.b32.xlu0 %v508, 24
        %v1002 = vpop.permute.xlu0 %1001
        %1003 = vrot.lane.b32.xlu0 %v509, 24
        %v1004 = vpop.permute.xlu0 %1003
        %1005 = vrot.lane.b32.xlu0 %v510, 24
        %v1006 = vpop.permute.xlu0 %1005
        %1007 = vrot.lane.b32.xlu0 %v511, 24
        %v1008 = vpop.permute.xlu0 %1007
        %1009 = vrot.lane.b32.xlu0 %v512, 24
        %v1010 = vpop.permute.xlu0 %1009
        %1011 = vrot.lane.b32.xlu0 %v496, 24
        %v1012 = vpop.permute.xlu0 %1011
        %1013 = vrot.lane.b32.xlu0 %v566, 28
        %v1014 = vpop.permute.xlu0 %1013
        %1015 = vrot.lane.b32.xlu0 %v578, 28
        %v1016 = vpop.permute.xlu0 %1015
        %1017 = vrot.lane.b32.xlu0 %v590, 28
        %v1018 = vpop.permute.xlu0 %1017
        %1019 = vrot.lane.b32.xlu0 %v602, 28
        %v1020 = vpop.permute.xlu0 %1019
        %1021 = vrot.lane.b32.xlu0 %v614, 28
        %v1022 = vpop.permute.xlu0 %1021
        %1023 = vrot.lane.b32.xlu0 %v626, 28
        %v1024 = vpop.permute.xlu0 %1023
        %1025 = vrot.lane.b32.xlu0 %v638, 28
        %v1026 = vpop.permute.xlu0 %1025
        %1027 = vrot.lane.b32.xlu0 %v650, 28
        %v1028 = vpop.permute.xlu0 %1027
        %1029 = vrot.lane.b32.xlu0 %v662, 28
        %v1030 = vpop.permute.xlu0 %1029
        %1031 = vrot.lane.b32.xlu0 %v674, 28
        %v1032 = vpop.permute.xlu0 %1031
        %1033 = vrot.lane.b32.xlu0 %v686, 28
        %v1034 = vpop.permute.xlu0 %1033
        %1035 = vrot.lane.b32.xlu0 %v698, 28
        %v1036 = vpop.permute.xlu0 %1035
        %1037 = vrot.lane.b32.xlu0 %v710, 28
        %v1038 = vpop.permute.xlu0 %1037
        %1039 = vrot.lane.b32.xlu0 %v722, 28
        %v1040 = vpop.permute.xlu0 %1039
        %1041 = vrot.lane.b32.xlu0 %v912, 28
        %v1042 = vpop.permute.xlu0 %1041
        %1043 = vrot.lane.b32.xlu0 %v542, 28
        %v1044 = vpop.permute.xlu0 %1043
        %1045 = vrot.lane.b32.xlu0 %v796, 32
        %v1046 = vpop.permute.xlu0 %1045
        %1047 = vrot.lane.b32.xlu0 %v799, 32
        %v1048 = vpop.permute.xlu0 %1047
        %1049 = vrot.lane.b32.xlu0 %v802, 32
        %v1050 = vpop.permute.xlu0 %1049
        %1051 = vrot.lane.b32.xlu0 %v805, 32
        %v1052 = vpop.permute.xlu0 %1051
        %1053 = vrot.lane.b32.xlu0 %v808, 32
        %v1054 = vpop.permute.xlu0 %1053
        %1055 = vrot.lane.b32.xlu0 %v811, 32
        %v1056 = vpop.permute.xlu0 %1055
        %1057 = vrot.lane.b32.xlu0 %v814, 32
        %v1058 = vpop.permute.xlu0 %1057
        %1059 = vrot.lane.b32.xlu0 %v817, 32
        %v1060 = vpop.permute.xlu0 %1059
        %1061 = vrot.lane.b32.xlu0 %v820, 32
        %v1062 = vpop.permute.xlu0 %1061
        %1063 = vrot.lane.b32.xlu0 %v823, 32
        %v1064 = vpop.permute.xlu0 %1063
        %1065 = vrot.lane.b32.xlu0 %v826, 32
        %v1066 = vpop.permute.xlu0 %1065
        %1067 = vrot.lane.b32.xlu0 %v829, 32
        %v1068 = vpop.permute.xlu0 %1067
        %1069 = vrot.lane.b32.xlu0 %v832, 32
        %v1070 = vpop.permute.xlu0 %1069
        %1071 = vrot.lane.b32.xlu0 %v835, 32
        %v1072 = vpop.permute.xlu0 %1071
        %1073 = vrot.lane.b32.xlu0 %v948, 32
        %v1074 = vpop.permute.xlu0 %1073
        %1075 = vrot.lane.b32.xlu0 %v790, 32
        %v1076 = vpop.permute.xlu0 %1075
        %vm1077 = vcmask 31744
        %v1079 = vsel %vm1077, %v496, %v724
        %v1081 = vsel %vm1077, %v497, %v726
        %v1083 = vsel %vm1077, %v498, %v728
        %v1085 = vsel %vm1077, %v499, %v730
        %v1087 = vsel %vm1077, %v500, %v732
        %v1089 = vsel %vm1077, %v501, %v734
        %v1091 = vsel %vm1077, %v502, %v736
        %v1093 = vsel %vm1077, %v503, %v738
        %v1095 = vsel %vm1077, %v504, %v740
        %v1097 = vsel %vm1077, %v505, %v742
        %v1099 = vsel %vm1077, %v506, %v744
        %v1101 = vsel %vm1077, %v507, %v746
        %v1103 = vsel %vm1077, %v508, %v748
        %v1105 = vsel %vm1077, %v509, %v750
        %v1107 = vsel %vm1077, %v510, %v752
        %v1109 = vsel %vm1077, %v511, %v754
        %vm1110 = vcmask 64512
        %v1112 = vsel %vm1110, %v1079, %v837
        %v1114 = vsel %vm1110, %v1081, %v839
        %v1116 = vsel %vm1110, %v1083, %v841
        %v1118 = vsel %vm1110, %v1085, %v843
        %v1120 = vsel %vm1110, %v1087, %v845
        %v1122 = vsel %vm1110, %v1089, %v847
        %v1124 = vsel %vm1110, %v1091, %v849
        %v1126 = vsel %vm1110, %v1093, %v851
        %v1128 = vsel %vm1110, %v1095, %v853
        %v1130 = vsel %vm1110, %v1097, %v855
        %v1132 = vsel %vm1110, %v1099, %v857
        %v1134 = vsel %vm1110, %v1101, %v859
        %v1136 = vsel %vm1110, %v1103, %v861
        %v1138 = vsel %vm1110, %v1105, %v863
        %v1140 = vsel %vm1110, %v1107, %v865
        %v1142 = vsel %vm1110, %v1109, %v867
        %vm1143 = vcmask 97280
        %v1145 = vsel %vm1143, %v1112, %v870
        %v1147 = vsel %vm1143, %v1114, %v872
        %v1149 = vsel %vm1143, %v1116, %v874
        %v1151 = vsel %vm1143, %v1118, %v876
        %v1153 = vsel %vm1143, %v1120, %v878
        %v1155 = vsel %vm1143, %v1122, %v880
        %v1157 = vsel %vm1143, %v1124, %v882
        %v1159 = vsel %vm1143, %v1126, %v884
        %v1161 = vsel %vm1143, %v1128, %v886
        %v1163 = vsel %vm1143, %v1130, %v888
        %v1165 = vsel %vm1143, %v1132, %v890
        %v1167 = vsel %vm1143, %v1134, %v892
        %v1169 = vsel %vm1143, %v1136, %v894
        %v1171 = vsel %vm1143, %v1138, %v896
        %v1173 = vsel %vm1143, %v1140, %v898
        %v1175 = vsel %vm1143, %v1142, %v900
        %vm1176 = vcmask 130048
        %v1178 = vsel %vm1176, %v1145, %v914
        %v1180 = vsel %vm1176, %v1147, %v916
        %v1182 = vsel %vm1176, %v1149, %v918
        %v1184 = vsel %vm1176, %v1151, %v920
        %v1186 = vsel %vm1176, %v1153, %v922
        %v1188 = vsel %vm1176, %v1155, %v924
        %v1190 = vsel %vm1176, %v1157, %v926
        %v1192 = vsel %vm1176, %v1159, %v928
        %v1194 = vsel %vm1176, %v1161, %v930
        %v1196 = vsel %vm1176, %v1163, %v932
        %v1198 = vsel %vm1176, %v1165, %v934
        %v1200 = vsel %vm1176, %v1167, %v936
        %v1202 = vsel %vm1176, %v1169, %v938
        %v1204 = vsel %vm1176, %v1171, %v940
        %v1206 = vsel %vm1176, %v1173, %v942
        %v1208 = vsel %vm1176, %v1175, %v944
        %vm1209 = vcmask 162816
        %v1211 = vsel %vm1209, %v1178, %v950
        %v1213 = vsel %vm1209, %v1180, %v952
        %v1215 = vsel %vm1209, %v1182, %v954
        %v1217 = vsel %vm1209, %v1184, %v956
        %v1219 = vsel %vm1209, %v1186, %v958
        %v1221 = vsel %vm1209, %v1188, %v960
        %v1223 = vsel %vm1209, %v1190, %v962
        %v1225 = vsel %vm1209, %v1192, %v964
        %v1227 = vsel %vm1209, %v1194, %v966
        %v1229 = vsel %vm1209, %v1196, %v968
        %v1231 = vsel %vm1209, %v1198, %v970
        %v1233 = vsel %vm1209, %v1200, %v972
        %v1235 = vsel %vm1209, %v1202, %v974
        %v1237 = vsel %vm1209, %v1204, %v976
        %v1239 = vsel %vm1209, %v1206, %v978
        %v1241 = vsel %vm1209, %v1208, %v980
        %vm1242 = vcmask 195584
        %v1244 = vsel %vm1242, %v1211, %v982
        %v1246 = vsel %vm1242, %v1213, %v984
        %v1248 = vsel %vm1242, %v1215, %v986
        %v1250 = vsel %vm1242, %v1217, %v988
        %v1252 = vsel %vm1242, %v1219, %v990
        %v1254 = vsel %vm1242, %v1221, %v992
        %v1256 = vsel %vm1242, %v1223, %v994
        %v1258 = vsel %vm1242, %v1225, %v996
        %v1260 = vsel %vm1242, %v1227, %v998
        %v1262 = vsel %vm1242, %v1229, %v1000
        %v1264 = vsel %vm1242, %v1231, %v1002
        %v1266 = vsel %vm1242, %v1233, %v1004
        %v1268 = vsel %vm1242, %v1235, %v1006
        %v1270 = vsel %vm1242, %v1237, %v1008
        %v1272 = vsel %vm1242, %v1239, %v1010
        %v1274 = vsel %vm1242, %v1241, %v1012
        %vm1275 = vcmask 228352
        %v1277 = vsel %vm1275, %v1244, %v1014
        %v1279 = vsel %vm1275, %v1246, %v1016
        %v1281 = vsel %vm1275, %v1248, %v1018
        %v1283 = vsel %vm1275, %v1250, %v1020
        %v1285 = vsel %vm1275, %v1252, %v1022
        %v1287 = vsel %vm1275, %v1254, %v1024
        %v1289 = vsel %vm1275, %v1256, %v1026
        %v1291 = vsel %vm1275, %v1258, %v1028
        %v1293 = vsel %vm1275, %v1260, %v1030
        %v1295 = vsel %vm1275, %v1262, %v1032
        %v1297 = vsel %vm1275, %v1264, %v1034
        %v1299 = vsel %vm1275, %v1266, %v1036
        %v1301 = vsel %vm1275, %v1268, %v1038
        %v1303 = vsel %vm1275, %v1270, %v1040
        %v1305 = vsel %vm1275, %v1272, %v1042
        %v1307 = vsel %vm1275, %v1274, %v1044
        %vm1308 = vcmask 261120
        %v1310 = vsel %vm1308, %v1277, %v1046
        %v1312 = vsel %vm1308, %v1279, %v1048
        %v1314 = vsel %vm1308, %v1281, %v1050
        %v1316 = vsel %vm1308, %v1283, %v1052
        %v1318 = vsel %vm1308, %v1285, %v1054
        %v1320 = vsel %vm1308, %v1287, %v1056
        %v1322 = vsel %vm1308, %v1289, %v1058
        %v1324 = vsel %vm1308, %v1291, %v1060
        %v1326 = vsel %vm1308, %v1293, %v1062
        %v1328 = vsel %vm1308, %v1295, %v1064
        %v1330 = vsel %vm1308, %v1297, %v1066
        %v1332 = vsel %vm1308, %v1299, %v1068
        %v1334 = vsel %vm1308, %v1301, %v1070
        %v1336 = vsel %vm1308, %v1303, %v1072
        %v1338 = vsel %vm1308, %v1305, %v1074
        %v1340 = vsel %vm1308, %v1307, %v1076
        %v1341 = vld [vmem:[%s2] sm:$0x1]
        %v1343 = vlaneseq
        %v1344 = vshrl.u32 %v1343, 7
        %v1345 = vsub.s32 0, %v1344
        %v1346 = vrot.slane %v1341, %v1345
        %v1353 = vunpack.c.l.b16 %v255
        %v1354 = vunpack.c.l.b16 %v256
        %v1355 = vunpack.c.l.b16 %v257
        %v1356 = vunpack.c.l.b16 %v258
        %v1357 = vunpack.c.l.b16 %v259
        %v1358 = vpack.c.b16 %v1354, %v1353
        %v1359 = vpack.c.b16 %v1356, %v1355
        %v1360 = vpack.c.b16 %v1357, %v1357
        %vm1363 = vcmask 293888
        %v1364 = vsel %vm1363, %v1310, 0
        %v1366 = vsel %vm1363, %v1312, 0
        %v1368 = vsel %vm1363, %v1314, 0
        %v1370 = vsel %vm1363, %v1316, 0
        %v1372 = vsel %vm1363, %v1318, 0
        %v1374 = vsel %vm1363, %v1320, 0
        %v1376 = vsel %vm1363, %v1322, 0
        %v1378 = vsel %vm1363, %v1324, 0
        %v1380 = vsel %vm1363, %v1326, 0
        %v1382 = vsel %vm1363, %v1328, 0
        %v1384 = vsel %vm1363, %v1330, 0
        %v1386 = vsel %vm1363, %v1332, 0
        %v1388 = vsel %vm1363, %v1334, 0
        %v1390 = vsel %vm1363, %v1336, 0
        %v1392 = vsel %vm1363, %v1338, 0
        %v1394 = vsel %vm1363, %v1340, 0
        %vm1396 = vcmask 1041408
        %v1398 = vsel %vm1396, %v1360, 0
        %1400 = vmatprep.subr.bf16.mxu0 0
        %1401 = vmatpush1.bf16.msra.mxu0 %v1358
        %1402 = vmatprep.subr.bf16.mxu0 0
        %1403 = vmatpush1.bf16.msra.mxu0 %v1359
        %1404 = vmatprep.subr.bf16.mxu0 0
        %1405 = vmatpush1.bf16.msra.mxu0 %v1398
        %1406 = vmatprep.subr.bf16.mxu0 0
        %1407 = vmatpush1.bf16.msra.mxu0 0
        %1408 = vmatprep.subr.bf16.mxu0 0
        %1409 = vmatpush1.bf16.msra.mxu0 0
        %1410 = vmatprep.subr.bf16.mxu0 0
        %1411 = vmatpush1.bf16.msra.mxu0 0
        %1412 = vmatprep.subr.bf16.mxu0 0
        %1413 = vmatpush1.bf16.msra.mxu0 0
        %1414 = vmatprep.subr.bf16.mxu0 0
        %1415 = vmatpush1.bf16.msra.mxu0 0
        %1416 = vmatprep.subr.bf16.mxu0 0
        %1417 = vmatpush1.bf16.msra.mxu0 0
        %1418 = vmatprep.subr.bf16.mxu0 0
        %1419 = vmatpush1.bf16.msra.mxu0 0
        %1420 = vmatprep.subr.bf16.mxu0 0
        %1421 = vmatpush1.bf16.msra.mxu0 0
        %1422 = vmatprep.subr.bf16.mxu0 0
        %1423 = vmatpush1.bf16.msra.mxu0 0
        %1424 = vmatprep.subr.bf16.mxu0 0
        %1425 = vmatpush1.bf16.msra.mxu0 0
        %1426 = vmatprep.subr.bf16.mxu0 0
        %1427 = vmatpush1.bf16.msra.mxu0 0
        %1428 = vmatprep.subr.bf16.mxu0 0
        %1429 = vmatpush1.bf16.msra.mxu0 0
        %1430 = vmatprep.subr.bf16.mxu0 0
        %1431 = vmatpush1.bf16.msra.mxu0 0
        %1432 = vmatprep.mubr.bf16.mxu0 0
        %1433 = vmatmul.mubr.bf16.gmra.mrb[0].mxu0 %v1364
        %v1434 = vpop.f32.mrb[0].mxu0
        %v1435 = vadd.f32 %v1346, %v1434
        %v1436 = vpop.f32.mrb[0].mxu0
        %v1437 = vpop.f32.mrb[0].mxu0
        %v1438 = vadd.f32 %v1346, %v1437
        %v1439 = vpop.f32.mrb[0].mxu0
        %1440 = vmatprep.mubr.bf16.mxu0 0
        %1441 = vmatmul.mubr.bf16.gmra.mrb[0].mxu0 %v1366
        %v1442 = vpop.f32.mrb[0].mxu0
        %v1443 = vadd.f32 %v1346, %v1442
        %v1444 = vpop.f32.mrb[0].mxu0
        %v1445 = vpop.f32.mrb[0].mxu0
        %v1446 = vadd.f32 %v1346, %v1445
        %v1447 = vpop.f32.mrb[0].mxu0
        %1448 = vmatprep.mubr.bf16.mxu0 0
        %1449 = vmatmul.mubr.bf16.gmra.mrb[0].mxu0 %v1368
        %v1450 = vpop.f32.mrb[0].mxu0
        %v1451 = vadd.f32 %v1346, %v1450
        %v1452 = vpop.f32.mrb[0].mxu0
        %v1453 = vpop.f32.mrb[0].mxu0
        %v1454 = vadd.f32 %v1346, %v1453
        %v1455 = vpop.f32.mrb[0].mxu0
        %1456 = vmatprep.mubr.bf16.mxu0 0
        %1457 = vmatmul.mubr.bf16.gmra.mrb[0].mxu0 %v1370
        %v1458 = vpop.f32.mrb[0].mxu0
        %v1459 = vadd.f32 %v1346, %v1458
        %v1460 = vpop.f32.mrb[0].mxu0
        %v1461 = vpop.f32.mrb[0].mxu0
        %v1462 = vadd.f32 %v1346, %v1461
        %v1463 = vpop.f32.mrb[0].mxu0
        %1464 = vmatprep.mubr.bf16.mxu0 0
        %1465 = vmatmul.mubr.bf16.gmra.mrb[0].mxu0 %v1372
        %v1466 = vpop.f32.mrb[0].mxu0
        %v1467 = vadd.f32 %v1346, %v1466
        %v1468 = vpop.f32.mrb[0].mxu0
        %v1469 = vpop.f32.mrb[0].mxu0
        %v1470 = vadd.f32 %v1346, %v1469
        %v1471 = vpop.f32.mrb[0].mxu0
        %1472 = vmatprep.mubr.bf16.mxu0 0
        %1473 = vmatmul.mubr.bf16.gmra.mrb[0].mxu0 %v1374
        %v1474 = vpop.f32.mrb[0].mxu0
        %v1475 = vadd.f32 %v1346, %v1474
        %v1476 = vpop.f32.mrb[0].mxu0
        %v1477 = vpop.f32.mrb[0].mxu0
        %v1478 = vadd.f32 %v1346, %v1477
        %v1479 = vpop.f32.mrb[0].mxu0
        %1480 = vmatprep.mubr.bf16.mxu0 0
        %1481 = vmatmul.mubr.bf16.gmra.mrb[0].mxu0 %v1376
        %v1482 = vpop.f32.mrb[0].mxu0
        %v1483 = vadd.f32 %v1346, %v1482
        %v1484 = vpop.f32.mrb[0].mxu0
        %v1485 = vpop.f32.mrb[0].mxu0
        %v1486 = vadd.f32 %v1346, %v1485
        %v1487 = vpop.f32.mrb[0].mxu0
        %1488 = vmatprep.mubr.bf16.mxu0 0
        %1489 = vmatmul.mubr.bf16.gmra.mrb[0].mxu0 %v1378
        %v1490 = vpop.f32.mrb[0].mxu0
        %v1491 = vadd.f32 %v1346, %v1490
        %v1492 = vpop.f32.mrb[0].mxu0
        %v1493 = vpop.f32.mrb[0].mxu0
        %v1494 = vadd.f32 %v1346, %v1493
        %v1495 = vpop.f32.mrb[0].mxu0
        %1496 = vmatprep.mubr.bf16.mxu0 0
        %1497 = vmatmul.mubr.bf16.gmra.mrb[0].mxu0 %v1380
        %v1498 = vpop.f32.mrb[0].mxu0
        %v1499 = vadd.f32 %v1346, %v1498
        %v1500 = vpop.f32.mrb[0].mxu0
        %v1501 = vpop.f32.mrb[0].mxu0
        %v1502 = vadd.f32 %v1346, %v1501
        %v1503 = vpop.f32.mrb[0].mxu0
        %1504 = vmatprep.mubr.bf16.mxu0 0
        %1505 = vmatmul.mubr.bf16.gmra.mrb[0].mxu0 %v1382
        %v1506 = vpop.f32.mrb[0].mxu0
        %v1507 = vadd.f32 %v1346, %v1506
        %v1508 = vpop.f32.mrb[0].mxu0
        %v1509 = vpop.f32.mrb[0].mxu0
        %v1510 = vadd.f32 %v1346, %v1509
        %v1511 = vpop.f32.mrb[0].mxu0
        %1512 = vmatprep.mubr.bf16.mxu0 0
        %1513 = vmatmul.mubr.bf16.gmra.mrb[0].mxu0 %v1384
        %v1514 = vpop.f32.mrb[0].mxu0
        %v1515 = vadd.f32 %v1346, %v1514
        %v1516 = vpop.f32.mrb[0].mxu0
        %v1517 = vpop.f32.mrb[0].mxu0
        %v1518 = vadd.f32 %v1346, %v1517
        %v1519 = vpop.f32.mrb[0].mxu0
        %1520 = vmatprep.mubr.bf16.mxu0 0
        %1521 = vmatmul.mubr.bf16.gmra.mrb[0].mxu0 %v1386
        %v1522 = vpop.f32.mrb[0].mxu0
        %v1523 = vadd.f32 %v1346, %v1522
        %v1524 = vpop.f32.mrb[0].mxu0
        %v1525 = vpop.f32.mrb[0].mxu0
        %v1526 = vadd.f32 %v1346, %v1525
        %v1527 = vpop.f32.mrb[0].mxu0
        %1528 = vmatprep.mubr.bf16.mxu0 0
        %1529 = vmatmul.mubr.bf16.gmra.mrb[0].mxu0 %v1388
        %v1530 = vpop.f32.mrb[0].mxu0
        %v1531 = vadd.f32 %v1346, %v1530
        %v1532 = vpop.f32.mrb[0].mxu0
        %v1533 = vpop.f32.mrb[0].mxu0
        %v1534 = vadd.f32 %v1346, %v1533
        %v1535 = vpop.f32.mrb[0].mxu0
        %1536 = vmatprep.mubr.bf16.mxu0 0
        %1537 = vmatmul.mubr.bf16.gmra.mrb[0].mxu0 %v1390
        %v1538 = vpop.f32.mrb[0].mxu0
        %v1539 = vadd.f32 %v1346, %v1538
        %v1540 = vpop.f32.mrb[0].mxu0
        %v1541 = vpop.f32.mrb[0].mxu0
        %v1542 = vadd.f32 %v1346, %v1541
        %v1543 = vpop.f32.mrb[0].mxu0
        %1544 = vmatprep.mubr.bf16.mxu0 0
        %1545 = vmatmul.mubr.bf16.gmra.mrb[0].mxu0 %v1392
        %v1546 = vpop.f32.mrb[0].mxu0
        %v1547 = vadd.f32 %v1346, %v1546
        %v1548 = vpop.f32.mrb[0].mxu0
        %v1549 = vpop.f32.mrb[0].mxu0
        %v1550 = vadd.f32 %v1346, %v1549
        %v1551 = vpop.f32.mrb[0].mxu0
        %1552 = vmatprep.mubr.bf16.mxu0 0
        %1553 = vmatmul.mubr.bf16.gmra.mrb[0].mxu0 %v1394
        %v1554 = vpop.f32.mrb[0].mxu0
        %v1555 = vadd.f32 %v1346, %v1554
        %v1556 = vpop.f32.mrb[0].mxu0
        %v1557 = vpop.f32.mrb[0].mxu0
        %v1558 = vadd.f32 %v1346, %v1557
        %v1559 = vpop.f32.mrb[0].mxu0
        %1560 = vdwg.mxu0
        %v1561 = vmax.f32 %v1435, 0.0
        %v1562 = vmax.f32 %v1438, 0.0
        %v1563 = vmax.f32 %v1443, 0.0
        %v1564 = vmax.f32 %v1446, 0.0
        %v1565 = vmax.f32 %v1451, 0.0
        %v1566 = vmax.f32 %v1454, 0.0
        %v1567 = vmax.f32 %v1459, 0.0
        %v1568 = vmax.f32 %v1462, 0.0
        %v1569 = vmax.f32 %v1467, 0.0
        %v1570 = vmax.f32 %v1470, 0.0
        %v1571 = vmax.f32 %v1475, 0.0
        %v1572 = vmax.f32 %v1478, 0.0
        %v1573 = vmax.f32 %v1483, 0.0
        %v1574 = vmax.f32 %v1486, 0.0
        %v1575 = vmax.f32 %v1491, 0.0
        %v1576 = vmax.f32 %v1494, 0.0
        %v1577 = vmax.f32 %v1499, 0.0
        %v1578 = vmax.f32 %v1502, 0.0
        %v1579 = vmax.f32 %v1507, 0.0
        %v1580 = vmax.f32 %v1510, 0.0
        %v1581 = vmax.f32 %v1515, 0.0
        %v1582 = vmax.f32 %v1518, 0.0
        %v1583 = vmax.f32 %v1523, 0.0
        %v1584 = vmax.f32 %v1526, 0.0
        %v1585 = vmax.f32 %v1531, 0.0
        %v1586 = vmax.f32 %v1534, 0.0
        %v1587 = vmax.f32 %v1539, 0.0
        %v1588 = vmax.f32 %v1542, 0.0
        %v1589 = vmax.f32 %v1547, 0.0
        %v1590 = vmax.f32 %v1550, 0.0
        %v1591 = vmax.f32 %v1555, 0.0
        %v1592 = vmax.f32 %v1558, 0.0
        %v1593 = vpack.c.bf16 %v1562, %v1561
        %v1594 = vpack.c.bf16 %v1564, %v1563
        %v1595 = vpack.c.bf16 %v1566, %v1565
        %v1596 = vpack.c.bf16 %v1568, %v1567
        %v1597 = vpack.c.bf16 %v1570, %v1569
        %v1598 = vpack.c.bf16 %v1572, %v1571
        %v1599 = vpack.c.bf16 %v1574, %v1573
        %v1600 = vpack.c.bf16 %v1576, %v1575
        %v1601 = vpack.c.bf16 %v1578, %v1577
        %v1602 = vpack.c.bf16 %v1580, %v1579
        %v1603 = vpack.c.bf16 %v1582, %v1581
        %v1604 = vpack.c.bf16 %v1584, %v1583
        %v1605 = vpack.c.bf16 %v1586, %v1585
        %v1606 = vpack.c.bf16 %v1588, %v1587
        %v1607 = vpack.c.bf16 %v1590, %v1589
        %v1608 = vpack.c.bf16 %v1592, %v1591
        %v1609 = vld [vmem:[%s3] sm:$0xf]
        %v1610 = vld [vmem:[%s3 + $0x4] sm:$0xf]
        %v1611 = vld [vmem:[%s3 + $0x8] sm:$0xf]
        %v1612 = vld [vmem:[%s3 + $0xc] sm:$0xf]
        %v1613 = vld [vmem:[%s3 + $0x10] sm:$0xf]
        %v1614 = vld [vmem:[%s3 + $0x14] sm:$0xf]
        %v1615 = vld [vmem:[%s3 + $0x18] sm:$0xf]
        %v1616 = vld [vmem:[%s3 + $0x1c] sm:$0xf]
        %v1617 = vld [vmem:[%s3 + $0x20] sm:$0xf]
        %v1619 = vshrl.u32 %v1593, 16
        %v1621 = vrot.slane %v1619, 7
        %v1622 = vshll.u32 %v1593, 16
        %v1624 = vor.u32 %v1621, %v1622
        %v1626 = vshrl.u32 %v1594, 16
        %v1628 = vrot.slane %v1626, 7
        %v1629 = vshll.u32 %v1594, 16
        %v1631 = vor.u32 %v1628, %v1629
        %v1633 = vshrl.u32 %v1595, 16
        %v1635 = vrot.slane %v1633, 7
        %v1636 = vshll.u32 %v1595, 16
        %v1638 = vor.u32 %v1635, %v1636
        %v1640 = vshrl.u32 %v1596, 16
        %v1642 = vrot.slane %v1640, 7
        %v1643 = vshll.u32 %v1596, 16
        %v1645 = vor.u32 %v1642, %v1643
        %v1647 = vshrl.u32 %v1597, 16
        %v1649 = vrot.slane %v1647, 7
        %v1650 = vshll.u32 %v1597, 16
        %v1652 = vor.u32 %v1649, %v1650
        %v1654 = vshrl.u32 %v1598, 16
        %v1656 = vrot.slane %v1654, 7
        %v1657 = vshll.u32 %v1598, 16
        %v1659 = vor.u32 %v1656, %v1657
        %v1661 = vshrl.u32 %v1599, 16
        %v1663 = vrot.slane %v1661, 7
        %v1664 = vshll.u32 %v1599, 16
        %v1666 = vor.u32 %v1663, %v1664
        %v1668 = vshrl.u32 %v1600, 16
        %v1670 = vrot.slane %v1668, 7
        %v1671 = vshll.u32 %v1600, 16
        %v1673 = vor.u32 %v1670, %v1671
        %v1675 = vshrl.u32 %v1601, 16
        %v1677 = vrot.slane %v1675, 7
        %v1678 = vshll.u32 %v1601, 16
        %v1680 = vor.u32 %v1677, %v1678
        %v1682 = vshrl.u32 %v1602, 16
        %v1684 = vrot.slane %v1682, 7
        %v1685 = vshll.u32 %v1602, 16
        %v1687 = vor.u32 %v1684, %v1685
        %v1689 = vshrl.u32 %v1603, 16
        %v1691 = vrot.slane %v1689, 7
        %v1692 = vshll.u32 %v1603, 16
        %v1694 = vor.u32 %v1691, %v1692
        %v1696 = vshrl.u32 %v1604, 16
        %v1698 = vrot.slane %v1696, 7
        %v1699 = vshll.u32 %v1604, 16
        %v1701 = vor.u32 %v1698, %v1699
        %v1703 = vshrl.u32 %v1605, 16
        %v1705 = vrot.slane %v1703, 7
        %v1706 = vshll.u32 %v1605, 16
        %v1708 = vor.u32 %v1705, %v1706
        %v1710 = vshrl.u32 %v1606, 16
        %v1712 = vrot.slane %v1710, 7
        %v1713 = vshll.u32 %v1606, 16
        %v1715 = vor.u32 %v1712, %v1713
        %v1717 = vshrl.u32 %v1607, 16
        %v1719 = vrot.slane %v1717, 7
        %v1720 = vshll.u32 %v1607, 16
        %v1722 = vor.u32 %v1719, %v1720
        %v1724 = vshrl.u32 %v1608, 16
        %v1726 = vrot.slane %v1724, 7
        %v1727 = vshll.u32 %v1608, 16
        %v1729 = vor.u32 %v1726, %v1727
        %v1762 = vsel %vm495, 0, %v1624
        %v1763 = vsel %vm495, 0, %v1631
        %v1764 = vsel %vm495, 0, %v1638
        %v1765 = vsel %vm495, 0, %v1645
        %v1766 = vsel %vm495, 0, %v1652
        %v1767 = vsel %vm495, 0, %v1659
        %v1768 = vsel %vm495, 0, %v1666
        %v1769 = vsel %vm495, 0, %v1673
        %v1770 = vsel %vm495, 0, %v1680
        %v1771 = vsel %vm495, 0, %v1687
        %v1772 = vsel %vm495, 0, %v1694
        %v1773 = vsel %vm495, 0, %v1701
        %v1774 = vsel %vm495, 0, %v1708
        %v1775 = vsel %vm495, 0, %v1715
        %v1776 = vsel %vm495, 0, %v1722
        %v1777 = vsel %vm495, 0, %v1729
        %v1778 = vsel %vm495, %v1621, 0
        %v1779 = vsel %vm495, %v1628, 0
        %v1780 = vsel %vm495, %v1635, 0
        %v1781 = vsel %vm495, %v1642, 0
        %v1782 = vsel %vm495, %v1649, 0
        %v1783 = vsel %vm495, %v1656, 0
        %v1784 = vsel %vm495, %v1663, 0
        %v1785 = vsel %vm495, %v1670, 0
        %v1786 = vsel %vm495, %v1677, 0
        %v1787 = vsel %vm495, %v1684, 0
        %v1788 = vsel %vm495, %v1691, 0
        %v1789 = vsel %vm495, %v1698, 0
        %v1790 = vsel %vm495, %v1705, 0
        %v1791 = vsel %vm495, %v1712, 0
        %v1792 = vsel %vm495, %v1719, 0
        %v1793 = vsel %vm495, %v1726, 0
        %v1795 = vshrl.u32 %v1762, 16
        %v1797 = vshll.u32 %v1762, 16
        %v1799 = vrot.slane %v1797, 1
        %v1800 = vor.u32 %v1795, %v1799
        %v1802 = vshll.u32 %v1778, 16
        %v1804 = vrot.slane %v1802, 1
        %v1805 = vsel %vm530, %v1800, %v1804
        %v1807 = vshrl.u32 %v1763, 16
        %v1809 = vshll.u32 %v1763, 16
        %v1811 = vrot.slane %v1809, 1
        %v1812 = vor.u32 %v1807, %v1811
        %v1814 = vshll.u32 %v1779, 16
        %v1816 = vrot.slane %v1814, 1
        %v1817 = vsel %vm530, %v1812, %v1816
        %v1819 = vshrl.u32 %v1764, 16
        %v1821 = vshll.u32 %v1764, 16
        %v1823 = vrot.slane %v1821, 1
        %v1824 = vor.u32 %v1819, %v1823
        %v1826 = vshll.u32 %v1780, 16
        %v1828 = vrot.slane %v1826, 1
        %v1829 = vsel %vm530, %v1824, %v1828
        %v1831 = vshrl.u32 %v1765, 16
        %v1833 = vshll.u32 %v1765, 16
        %v1835 = vrot.slane %v1833, 1
        %v1836 = vor.u32 %v1831, %v1835
        %v1838 = vshll.u32 %v1781, 16
        %v1840 = vrot.slane %v1838, 1
        %v1841 = vsel %vm530, %v1836, %v1840
        %v1843 = vshrl.u32 %v1766, 16
        %v1845 = vshll.u32 %v1766, 16
        %v1847 = vrot.slane %v1845, 1
        %v1848 = vor.u32 %v1843, %v1847
        %v1850 = vshll.u32 %v1782, 16
        %v1852 = vrot.slane %v1850, 1
        %v1853 = vsel %vm530, %v1848, %v1852
        %v1855 = vshrl.u32 %v1767, 16
        %v1857 = vshll.u32 %v1767, 16
        %v1859 = vrot.slane %v1857, 1
        %v1860 = vor.u32 %v1855, %v1859
        %v1862 = vshll.u32 %v1783, 16
        %v1864 = vrot.slane %v1862, 1
        %v1865 = vsel %vm530, %v1860, %v1864
        %v1867 = vshrl.u32 %v1768, 16
        %v1869 = vshll.u32 %v1768, 16
        %v1871 = vrot.slane %v1869, 1
        %v1872 = vor.u32 %v1867, %v1871
        %v1874 = vshll.u32 %v1784, 16
        %v1876 = vrot.slane %v1874, 1
        %v1877 = vsel %vm530, %v1872, %v1876
        %v1879 = vshrl.u32 %v1769, 16
        %v1881 = vshll.u32 %v1769, 16
        %v1883 = vrot.slane %v1881, 1
        %v1884 = vor.u32 %v1879, %v1883
        %v1886 = vshll.u32 %v1785, 16
        %v1888 = vrot.slane %v1886, 1
        %v1889 = vsel %vm530, %v1884, %v1888
        %v1891 = vshrl.u32 %v1770, 16
        %v1893 = vshll.u32 %v1770, 16
        %v1895 = vrot.slane %v1893, 1
        %v1896 = vor.u32 %v1891, %v1895
        %v1898 = vshll.u32 %v1786, 16
        %v1900 = vrot.slane %v1898, 1
        %v1901 = vsel %vm530, %v1896, %v1900
        %v1903 = vshrl.u32 %v1771, 16
        %v1905 = vshll.u32 %v1771, 16
        %v1907 = vrot.slane %v1905, 1
        %v1908 = vor.u32 %v1903, %v1907
        %v1910 = vshll.u32 %v1787, 16
        %v1912 = vrot.slane %v1910, 1
        %v1913 = vsel %vm530, %v1908, %v1912
        %v1915 = vshrl.u32 %v1772, 16
        %v1917 = vshll.u32 %v1772, 16
        %v1919 = vrot.slane %v1917, 1
        %v1920 = vor.u32 %v1915, %v1919
        %v1922 = vshll.u32 %v1788, 16
        %v1924 = vrot.slane %v1922, 1
        %v1925 = vsel %vm530, %v1920, %v1924
        %v1927 = vshrl.u32 %v1773, 16
        %v1929 = vshll.u32 %v1773, 16
        %v1931 = vrot.slane %v1929, 1
        %v1932 = vor.u32 %v1927, %v1931
        %v1934 = vshll.u32 %v1789, 16
        %v1936 = vrot.slane %v1934, 1
        %v1937 = vsel %vm530, %v1932, %v1936
        %v1939 = vshrl.u32 %v1774, 16
        %v1941 = vshll.u32 %v1774, 16
        %v1943 = vrot.slane %v1941, 1
        %v1944 = vor.u32 %v1939, %v1943
        %v1946 = vshll.u32 %v1790, 16
        %v1948 = vrot.slane %v1946, 1
        %v1949 = vsel %vm530, %v1944, %v1948
        %v1951 = vshrl.u32 %v1775, 16
        %v1953 = vshll.u32 %v1775, 16
        %v1955 = vrot.slane %v1953, 1
        %v1956 = vor.u32 %v1951, %v1955
        %v1958 = vshll.u32 %v1791, 16
        %v1960 = vrot.slane %v1958, 1
        %v1961 = vsel %vm530, %v1956, %v1960
        %v1963 = vshrl.u32 %v1776, 16
        %v1965 = vshll.u32 %v1776, 16
        %v1967 = vrot.slane %v1965, 1
        %v1968 = vor.u32 %v1963, %v1967
        %v1970 = vshll.u32 %v1792, 16
        %v1972 = vrot.slane %v1970, 1
        %v1973 = vsel %vm530, %v1968, %v1972
        %1974 = vrot.lane.b32.xlu0 %v542, 8
        %v1975 = vpop.permute.xlu0 %1974
        %1976 = vrot.lane.b32.xlu0 %v1805, 8
        %v1977 = vpop.permute.xlu0 %1976
        %1978 = vrot.lane.b32.xlu0 %v1817, 8
        %v1979 = vpop.permute.xlu0 %1978
        %1980 = vrot.lane.b32.xlu0 %v1829, 8
        %v1981 = vpop.permute.xlu0 %1980
        %1982 = vrot.lane.b32.xlu0 %v1841, 8
        %v1983 = vpop.permute.xlu0 %1982
        %1984 = vrot.lane.b32.xlu0 %v1853, 8
        %v1985 = vpop.permute.xlu0 %1984
        %1986 = vrot.lane.b32.xlu0 %v1865, 8
        %v1987 = vpop.permute.xlu0 %1986
        %1988 = vrot.lane.b32.xlu0 %v1877, 8
        %v1989 = vpop.permute.xlu0 %1988
        %1990 = vrot.lane.b32.xlu0 %v1889, 8
        %v1991 = vpop.permute.xlu0 %1990
        %1992 = vrot.lane.b32.xlu0 %v1901, 8
        %v1993 = vpop.permute.xlu0 %1992
        %1994 = vrot.lane.b32.xlu0 %v1913, 8
        %v1995 = vpop.permute.xlu0 %1994
        %1996 = vrot.lane.b32.xlu0 %v1925, 8
        %v1997 = vpop.permute.xlu0 %1996
        %1998 = vrot.lane.b32.xlu0 %v1937, 8
        %v1999 = vpop.permute.xlu0 %1998
        %2000 = vrot.lane.b32.xlu0 %v1949, 8
        %v2001 = vpop.permute.xlu0 %2000
        %2002 = vrot.lane.b32.xlu0 %v1961, 8
        %v2003 = vpop.permute.xlu0 %2002
        %2004 = vrot.lane.b32.xlu0 %v1973, 8
        %v2005 = vpop.permute.xlu0 %2004
        %v2036 = vrot.slane %v1762, 1
        %v2037 = vrot.slane %v1778, 1
        %v2038 = vsel %vm787, %v2036, %v2037
        %v2039 = vrot.slane %v1763, 1
        %v2040 = vrot.slane %v1779, 1
        %v2041 = vsel %vm787, %v2039, %v2040
        %v2042 = vrot.slane %v1764, 1
        %v2043 = vrot.slane %v1780, 1
        %v2044 = vsel %vm787, %v2042, %v2043
        %v2045 = vrot.slane %v1765, 1
        %v2046 = vrot.slane %v1781, 1
        %v2047 = vsel %vm787, %v2045, %v2046
        %v2048 = vrot.slane %v1766, 1
        %v2049 = vrot.slane %v1782, 1
        %v2050 = vsel %vm787, %v2048, %v2049
        %v2051 = vrot.slane %v1767, 1
        %v2052 = vrot.slane %v1783, 1
        %v2053 = vsel %vm787, %v2051, %v2052
        %v2054 = vrot.slane %v1768, 1
        %v2055 = vrot.slane %v1784, 1
        %v2056 = vsel %vm787, %v2054, %v2055
        %v2057 = vrot.slane %v1769, 1
        %v2058 = vrot.slane %v1785, 1
        %v2059 = vsel %vm787, %v2057, %v2058
        %v2060 = vrot.slane %v1770, 1
        %v2061 = vrot.slane %v1786, 1
        %v2062 = vsel %vm787, %v2060, %v2061
        %v2063 = vrot.slane %v1771, 1
        %v2064 = vrot.slane %v1787, 1
        %v2065 = vsel %vm787, %v2063, %v2064
        %v2066 = vrot.slane %v1772, 1
        %v2067 = vrot.slane %v1788, 1
        %v2068 = vsel %vm787, %v2066, %v2067
        %v2069 = vrot.slane %v1773, 1
        %v2070 = vrot.slane %v1789, 1
        %v2071 = vsel %vm787, %v2069, %v2070
        %v2072 = vrot.slane %v1774, 1
        %v2073 = vrot.slane %v1790, 1
        %v2074 = vsel %vm787, %v2072, %v2073
        %v2075 = vrot.slane %v1775, 1
        %v2076 = vrot.slane %v1791, 1
        %v2077 = vsel %vm787, %v2075, %v2076
        %v2078 = vrot.slane %v1776, 1
        %v2079 = vrot.slane %v1792, 1
        %v2080 = vsel %vm787, %v2078, %v2079
        %2081 = vrot.lane.b32.xlu0 %v790, 16
        %v2082 = vpop.permute.xlu0 %2081
        %2083 = vrot.lane.b32.xlu0 %v2038, 16
        %v2084 = vpop.permute.xlu0 %2083
        %2085 = vrot.lane.b32.xlu0 %v2041, 16
        %v2086 = vpop.permute.xlu0 %2085
        %2087 = vrot.lane.b32.xlu0 %v2044, 16
        %v2088 = vpop.permute.xlu0 %2087
        %2089 = vrot.lane.b32.xlu0 %v2047, 16
        %v2090 = vpop.permute.xlu0 %2089
        %2091 = vrot.lane.b32.xlu0 %v2050, 16
        %v2092 = vpop.permute.xlu0 %2091
        %2093 = vrot.lane.b32.xlu0 %v2053, 16
        %v2094 = vpop.permute.xlu0 %2093
        %2095 = vrot.lane.b32.xlu0 %v2056, 16
        %v2096 = vpop.permute.xlu0 %2095
        %2097 = vrot.lane.b32.xlu0 %v2059, 16
        %v2098 = vpop.permute.xlu0 %2097
        %2099 = vrot.lane.b32.xlu0 %v2062, 16
        %v2100 = vpop.permute.xlu0 %2099
        %2101 = vrot.lane.b32.xlu0 %v2065, 16
        %v2102 = vpop.permute.xlu0 %2101
        %2103 = vrot.lane.b32.xlu0 %v2068, 16
        %v2104 = vpop.permute.xlu0 %2103
        %2105 = vrot.lane.b32.xlu0 %v2071, 16
        %v2106 = vpop.permute.xlu0 %2105
        %2107 = vrot.lane.b32.xlu0 %v2074, 16
        %v2108 = vpop.permute.xlu0 %2107
        %2109 = vrot.lane.b32.xlu0 %v2077, 16
        %v2110 = vpop.permute.xlu0 %2109
        %2111 = vrot.lane.b32.xlu0 %v2080, 16
        %v2112 = vpop.permute.xlu0 %2111
        %2114 = vrot.lane.b32.xlu0 %v1762, 24
        %v2115 = vpop.permute.xlu0 %2114
        %2116 = vrot.lane.b32.xlu0 %v1763, 24
        %v2117 = vpop.permute.xlu0 %2116
        %2118 = vrot.lane.b32.xlu0 %v1764, 24
        %v2119 = vpop.permute.xlu0 %2118
        %2120 = vrot.lane.b32.xlu0 %v1765, 24
        %v2121 = vpop.permute.xlu0 %2120
        %2122 = vrot.lane.b32.xlu0 %v1766, 24
        %v2123 = vpop.permute.xlu0 %2122
        %2124 = vrot.lane.b32.xlu0 %v1767, 24
        %v2125 = vpop.permute.xlu0 %2124
        %2126 = vrot.lane.b32.xlu0 %v1768, 24
        %v2127 = vpop.permute.xlu0 %2126
        %2128 = vrot.lane.b32.xlu0 %v1769, 24
        %v2129 = vpop.permute.xlu0 %2128
        %2130 = vrot.lane.b32.xlu0 %v1770, 24
        %v2131 = vpop.permute.xlu0 %2130
        %2132 = vrot.lane.b32.xlu0 %v1771, 24
        %v2133 = vpop.permute.xlu0 %2132
        %2134 = vrot.lane.b32.xlu0 %v1772, 24
        %v2135 = vpop.permute.xlu0 %2134
        %2136 = vrot.lane.b32.xlu0 %v1773, 24
        %v2137 = vpop.permute.xlu0 %2136
        %2138 = vrot.lane.b32.xlu0 %v1774, 24
        %v2139 = vpop.permute.xlu0 %2138
        %2140 = vrot.lane.b32.xlu0 %v1775, 24
        %v2141 = vpop.permute.xlu0 %2140
        %2142 = vrot.lane.b32.xlu0 %v1776, 24
        %v2143 = vpop.permute.xlu0 %2142
        %2144 = vrot.lane.b32.xlu0 %v1777, 24
        %v2145 = vpop.permute.xlu0 %2144
        %v2147 = vshrl.u32 %v1777, 16
        %v2149 = vshll.u32 %v1777, 16
        %v2151 = vrot.slane %v2149, 1
        %v2152 = vor.u32 %v2147, %v2151
        %v2154 = vshll.u32 %v1793, 16
        %v2156 = vrot.slane %v2154, 1
        %v2157 = vsel %vm530, %v2152, %v2156
        %2158 = vrot.lane.b32.xlu0 %v1805, 32
        %v2159 = vpop.permute.xlu0 %2158
        %2160 = vrot.lane.b32.xlu0 %v1817, 32
        %v2161 = vpop.permute.xlu0 %2160
        %2162 = vrot.lane.b32.xlu0 %v1829, 32
        %v2163 = vpop.permute.xlu0 %2162
        %2164 = vrot.lane.b32.xlu0 %v1841, 32
        %v2165 = vpop.permute.xlu0 %2164
        %2166 = vrot.lane.b32.xlu0 %v1853, 32
        %v2167 = vpop.permute.xlu0 %2166
        %2168 = vrot.lane.b32.xlu0 %v1865, 32
        %v2169 = vpop.permute.xlu0 %2168
        %2170 = vrot.lane.b32.xlu0 %v1877, 32
        %v2171 = vpop.permute.xlu0 %2170
        %2172 = vrot.lane.b32.xlu0 %v1889, 32
        %v2173 = vpop.permute.xlu0 %2172
        %2174 = vrot.lane.b32.xlu0 %v1901, 32
        %v2175 = vpop.permute.xlu0 %2174
        %2176 = vrot.lane.b32.xlu0 %v1913, 32
        %v2177 = vpop.permute.xlu0 %2176
        %2178 = vrot.lane.b32.xlu0 %v1925, 32
        %v2179 = vpop.permute.xlu0 %2178
        %2180 = vrot.lane.b32.xlu0 %v1937, 32
        %v2181 = vpop.permute.xlu0 %2180
        %2182 = vrot.lane.b32.xlu0 %v1949, 32
        %v2183 = vpop.permute.xlu0 %2182
        %2184 = vrot.lane.b32.xlu0 %v1961, 32
        %v2185 = vpop.permute.xlu0 %2184
        %2186 = vrot.lane.b32.xlu0 %v1973, 32
        %v2187 = vpop.permute.xlu0 %2186
        %2188 = vrot.lane.b32.xlu0 %v2157, 32
        %v2189 = vpop.permute.xlu0 %2188
        %v2191 = vrot.slane %v1777, 1
        %v2192 = vrot.slane %v1793, 1
        %v2193 = vsel %vm787, %v2191, %v2192
        %2194 = vrot.lane.b32.xlu0 %v2038, 40
        %v2195 = vpop.permute.xlu0 %2194
        %2196 = vrot.lane.b32.xlu0 %v2041, 40
        %v2197 = vpop.permute.xlu0 %2196
        %2198 = vrot.lane.b32.xlu0 %v2044, 40
        %v2199 = vpop.permute.xlu0 %2198
        %2200 = vrot.lane.b32.xlu0 %v2047, 40
        %v2201 = vpop.permute.xlu0 %2200
        %2202 = vrot.lane.b32.xlu0 %v2050, 40
        %v2203 = vpop.permute.xlu0 %2202
        %2204 = vrot.lane.b32.xlu0 %v2053, 40
        %v2205 = vpop.permute.xlu0 %2204
        %2206 = vrot.lane.b32.xlu0 %v2056, 40
        %v2207 = vpop.permute.xlu0 %2206
        %2208 = vrot.lane.b32.xlu0 %v2059, 40
        %v2209 = vpop.permute.xlu0 %2208
        %2210 = vrot.lane.b32.xlu0 %v2062, 40
        %v2211 = vpop.permute.xlu0 %2210
        %2212 = vrot.lane.b32.xlu0 %v2065, 40
        %v2213 = vpop.permute.xlu0 %2212
        %2214 = vrot.lane.b32.xlu0 %v2068, 40
        %v2215 = vpop.permute.xlu0 %2214
        %2216 = vrot.lane.b32.xlu0 %v2071, 40
        %v2217 = vpop.permute.xlu0 %2216
        %2218 = vrot.lane.b32.xlu0 %v2074, 40
        %v2219 = vpop.permute.xlu0 %2218
        %2220 = vrot.lane.b32.xlu0 %v2077, 40
        %v2221 = vpop.permute.xlu0 %2220
        %2222 = vrot.lane.b32.xlu0 %v2080, 40
        %v2223 = vpop.permute.xlu0 %2222
        %2224 = vrot.lane.b32.xlu0 %v2193, 40
        %v2225 = vpop.permute.xlu0 %2224
        %2226 = vrot.lane.b32.xlu0 %v1763, 48
        %v2227 = vpop.permute.xlu0 %2226
        %2228 = vrot.lane.b32.xlu0 %v1764, 48
        %v2229 = vpop.permute.xlu0 %2228
        %2230 = vrot.lane.b32.xlu0 %v1765, 48
        %v2231 = vpop.permute.xlu0 %2230
        %2232 = vrot.lane.b32.xlu0 %v1766, 48
        %v2233 = vpop.permute.xlu0 %2232
        %2234 = vrot.lane.b32.xlu0 %v1767, 48
        %v2235 = vpop.permute.xlu0 %2234
        %2236 = vrot.lane.b32.xlu0 %v1768, 48
        %v2237 = vpop.permute.xlu0 %2236
        %2238 = vrot.lane.b32.xlu0 %v1769, 48
        %v2239 = vpop.permute.xlu0 %2238
        %2240 = vrot.lane.b32.xlu0 %v1770, 48
        %v2241 = vpop.permute.xlu0 %2240
        %2242 = vrot.lane.b32.xlu0 %v1771, 48
        %v2243 = vpop.permute.xlu0 %2242
        %2244 = vrot.lane.b32.xlu0 %v1772, 48
        %v2245 = vpop.permute.xlu0 %2244
        %2246 = vrot.lane.b32.xlu0 %v1773, 48
        %v2247 = vpop.permute.xlu0 %2246
        %2248 = vrot.lane.b32.xlu0 %v1774, 48
        %v2249 = vpop.permute.xlu0 %2248
        %2250 = vrot.lane.b32.xlu0 %v1775, 48
        %v2251 = vpop.permute.xlu0 %2250
        %2252 = vrot.lane.b32.xlu0 %v1776, 48
        %v2253 = vpop.permute.xlu0 %2252
        %2254 = vrot.lane.b32.xlu0 %v1777, 48
        %v2255 = vpop.permute.xlu0 %2254
        %2256 = vrot.lane.b32.xlu0 %v496, 48
        %v2257 = vpop.permute.xlu0 %2256
        %2258 = vrot.lane.b32.xlu0 %v1817, 56
        %v2259 = vpop.permute.xlu0 %2258
        %2260 = vrot.lane.b32.xlu0 %v1829, 56
        %v2261 = vpop.permute.xlu0 %2260
        %2262 = vrot.lane.b32.xlu0 %v1841, 56
        %v2263 = vpop.permute.xlu0 %2262
        %2264 = vrot.lane.b32.xlu0 %v1853, 56
        %v2265 = vpop.permute.xlu0 %2264
        %2266 = vrot.lane.b32.xlu0 %v1865, 56
        %v2267 = vpop.permute.xlu0 %2266
        %2268 = vrot.lane.b32.xlu0 %v1877, 56
        %v2269 = vpop.permute.xlu0 %2268
        %2270 = vrot.lane.b32.xlu0 %v1889, 56
        %v2271 = vpop.permute.xlu0 %2270
        %2272 = vrot.lane.b32.xlu0 %v1901, 56
        %v2273 = vpop.permute.xlu0 %2272
        %2274 = vrot.lane.b32.xlu0 %v1913, 56
        %v2275 = vpop.permute.xlu0 %2274
        %2276 = vrot.lane.b32.xlu0 %v1925, 56
        %v2277 = vpop.permute.xlu0 %2276
        %2278 = vrot.lane.b32.xlu0 %v1937, 56
        %v2279 = vpop.permute.xlu0 %2278
        %2280 = vrot.lane.b32.xlu0 %v1949, 56
        %v2281 = vpop.permute.xlu0 %2280
        %2282 = vrot.lane.b32.xlu0 %v1961, 56
        %v2283 = vpop.permute.xlu0 %2282
        %2284 = vrot.lane.b32.xlu0 %v1973, 56
        %v2285 = vpop.permute.xlu0 %2284
        %2286 = vrot.lane.b32.xlu0 %v2157, 56
        %v2287 = vpop.permute.xlu0 %2286
        %2288 = vrot.lane.b32.xlu0 %v542, 56
        %v2289 = vpop.permute.xlu0 %2288
        %2290 = vrot.lane.b32.xlu0 %v2041, 64
        %v2291 = vpop.permute.xlu0 %2290
        %2292 = vrot.lane.b32.xlu0 %v2044, 64
        %v2293 = vpop.permute.xlu0 %2292
        %2294 = vrot.lane.b32.xlu0 %v2047, 64
        %v2295 = vpop.permute.xlu0 %2294
        %2296 = vrot.lane.b32.xlu0 %v2050, 64
        %v2297 = vpop.permute.xlu0 %2296
        %2298 = vrot.lane.b32.xlu0 %v2053, 64
        %v2299 = vpop.permute.xlu0 %2298
        %2300 = vrot.lane.b32.xlu0 %v2056, 64
        %v2301 = vpop.permute.xlu0 %2300
        %2302 = vrot.lane.b32.xlu0 %v2059, 64
        %v2303 = vpop.permute.xlu0 %2302
        %2304 = vrot.lane.b32.xlu0 %v2062, 64
        %v2305 = vpop.permute.xlu0 %2304
        %2306 = vrot.lane.b32.xlu0 %v2065, 64
        %v2307 = vpop.permute.xlu0 %2306
        %2308 = vrot.lane.b32.xlu0 %v2068, 64
        %v2309 = vpop.permute.xlu0 %2308
        %2310 = vrot.lane.b32.xlu0 %v2071, 64
        %v2311 = vpop.permute.xlu0 %2310
        %2312 = vrot.lane.b32.xlu0 %v2074, 64
        %v2313 = vpop.permute.xlu0 %2312
        %2314 = vrot.lane.b32.xlu0 %v2077, 64
        %v2315 = vpop.permute.xlu0 %2314
        %2316 = vrot.lane.b32.xlu0 %v2080, 64
        %v2317 = vpop.permute.xlu0 %2316
        %2318 = vrot.lane.b32.xlu0 %v2193, 64
        %v2319 = vpop.permute.xlu0 %2318
        %2320 = vrot.lane.b32.xlu0 %v790, 64
        %v2321 = vpop.permute.xlu0 %2320
        %v2323 = vsel %vm1110, %v496, %v1975
        %v2325 = vsel %vm1110, %v1762, %v1977
        %v2327 = vsel %vm1110, %v1763, %v1979
        %v2329 = vsel %vm1110, %v1764, %v1981
        %v2331 = vsel %vm1110, %v1765, %v1983
        %v2333 = vsel %vm1110, %v1766, %v1985
        %v2335 = vsel %vm1110, %v1767, %v1987
        %v2337 = vsel %vm1110, %v1768, %v1989
        %v2339 = vsel %vm1110, %v1769, %v1991
        %v2341 = vsel %vm1110, %v1770, %v1993
        %v2343 = vsel %vm1110, %v1771, %v1995
        %v2345 = vsel %vm1110, %v1772, %v1997
        %v2347 = vsel %vm1110, %v1773, %v1999
        %v2349 = vsel %vm1110, %v1774, %v2001
        %v2351 = vsel %vm1110, %v1775, %v2003
        %v2353 = vsel %vm1110, %v1776, %v2005
        %v2355 = vsel %vm1176, %v2323, %v2082
        %v2357 = vsel %vm1176, %v2325, %v2084
        %v2359 = vsel %vm1176, %v2327, %v2086
        %v2361 = vsel %vm1176, %v2329, %v2088
        %v2363 = vsel %vm1176, %v2331, %v2090
        %v2365 = vsel %vm1176, %v2333, %v2092
        %v2367 = vsel %vm1176, %v2335, %v2094
        %v2369 = vsel %vm1176, %v2337, %v2096
        %v2371 = vsel %vm1176, %v2339, %v2098
        %v2373 = vsel %vm1176, %v2341, %v2100
        %v2375 = vsel %vm1176, %v2343, %v2102
        %v2377 = vsel %vm1176, %v2345, %v2104
        %v2379 = vsel %vm1176, %v2347, %v2106
        %v2381 = vsel %vm1176, %v2349, %v2108
        %v2383 = vsel %vm1176, %v2351, %v2110
        %v2385 = vsel %vm1176, %v2353, %v2112
        %v2387 = vsel %vm1242, %v2355, %v2115
        %v2389 = vsel %vm1242, %v2357, %v2117
        %v2391 = vsel %vm1242, %v2359, %v2119
        %v2393 = vsel %vm1242, %v2361, %v2121
        %v2395 = vsel %vm1242, %v2363, %v2123
        %v2397 = vsel %vm1242, %v2365, %v2125
        %v2399 = vsel %vm1242, %v2367, %v2127
        %v2401 = vsel %vm1242, %v2369, %v2129
        %v2403 = vsel %vm1242, %v2371, %v2131
        %v2405 = vsel %vm1242, %v2373, %v2133
        %v2407 = vsel %vm1242, %v2375, %v2135
        %v2409 = vsel %vm1242, %v2377, %v2137
        %v2411 = vsel %vm1242, %v2379, %v2139
        %v2413 = vsel %vm1242, %v2381, %v2141
        %v2415 = vsel %vm1242, %v2383, %v2143
        %v2417 = vsel %vm1242, %v2385, %v2145
        %v2419 = vsel %vm1308, %v2387, %v2159
        %v2421 = vsel %vm1308, %v2389, %v2161
        %v2423 = vsel %vm1308, %v2391, %v2163
        %v2425 = vsel %vm1308, %v2393, %v2165
        %v2427 = vsel %vm1308, %v2395, %v2167
        %v2429 = vsel %vm1308, %v2397, %v2169
        %v2431 = vsel %vm1308, %v2399, %v2171
        %v2433 = vsel %vm1308, %v2401, %v2173
        %v2435 = vsel %vm1308, %v2403, %v2175
        %v2437 = vsel %vm1308, %v2405, %v2177
        %v2439 = vsel %vm1308, %v2407, %v2179
        %v2441 = vsel %vm1308, %v2409, %v2181
        %v2443 = vsel %vm1308, %v2411, %v2183
        %v2445 = vsel %vm1308, %v2413, %v2185
        %v2447 = vsel %vm1308, %v2415, %v2187
        %v2449 = vsel %vm1308, %v2417, %v2189
        %vm2450 = vcmask 326656
        %v2452 = vsel %vm2450, %v2419, %v2195
        %v2454 = vsel %vm2450, %v2421, %v2197
        %v2456 = vsel %vm2450, %v2423, %v2199
        %v2458 = vsel %vm2450, %v2425, %v2201
        %v2460 = vsel %vm2450, %v2427, %v2203
        %v2462 = vsel %vm2450, %v2429, %v2205
        %v2464 = vsel %vm2450, %v2431, %v2207
        %v2466 = vsel %vm2450, %v2433, %v2209
        %v2468 = vsel %vm2450, %v2435, %v2211
        %v2470 = vsel %vm2450, %v2437, %v2213
        %v2472 = vsel %vm2450, %v2439, %v2215
        %v2474 = vsel %vm2450, %v2441, %v2217
        %v2476 = vsel %vm2450, %v2443, %v2219
        %v2478 = vsel %vm2450, %v2445, %v2221
        %v2480 = vsel %vm2450, %v2447, %v2223
        %v2482 = vsel %vm2450, %v2449, %v2225
        %vm2483 = vcmask 392192
        %v2485 = vsel %vm2483, %v2452, %v2227
        %v2487 = vsel %vm2483, %v2454, %v2229
        %v2489 = vsel %vm2483, %v2456, %v2231
        %v2491 = vsel %vm2483, %v2458, %v2233
        %v2493 = vsel %vm2483, %v2460, %v2235
        %v2495 = vsel %vm2483, %v2462, %v2237
        %v2497 = vsel %vm2483, %v2464, %v2239
        %v2499 = vsel %vm2483, %v2466, %v2241
        %v2501 = vsel %vm2483, %v2468, %v2243
        %v2503 = vsel %vm2483, %v2470, %v2245
        %v2505 = vsel %vm2483, %v2472, %v2247
        %v2507 = vsel %vm2483, %v2474, %v2249
        %v2509 = vsel %vm2483, %v2476, %v2251
        %v2511 = vsel %vm2483, %v2478, %v2253
        %v2513 = vsel %vm2483, %v2480, %v2255
        %v2515 = vsel %vm2483, %v2482, %v2257
        %vm2516 = vcmask 457728
        %v2518 = vsel %vm2516, %v2485, %v2259
        %v2520 = vsel %vm2516, %v2487, %v2261
        %v2522 = vsel %vm2516, %v2489, %v2263
        %v2524 = vsel %vm2516, %v2491, %v2265
        %v2526 = vsel %vm2516, %v2493, %v2267
        %v2528 = vsel %vm2516, %v2495, %v2269
        %v2530 = vsel %vm2516, %v2497, %v2271
        %v2532 = vsel %vm2516, %v2499, %v2273
        %v2534 = vsel %vm2516, %v2501, %v2275
        %v2536 = vsel %vm2516, %v2503, %v2277
        %v2538 = vsel %vm2516, %v2505, %v2279
        %v2540 = vsel %vm2516, %v2507, %v2281
        %v2542 = vsel %vm2516, %v2509, %v2283
        %v2544 = vsel %vm2516, %v2511, %v2285
        %v2546 = vsel %vm2516, %v2513, %v2287
        %v2548 = vsel %vm2516, %v2515, %v2289
        %vm2549 = vcmask 523264
        %v2551 = vsel %vm2549, %v2518, %v2291
        %v2553 = vsel %vm2549, %v2520, %v2293
        %v2555 = vsel %vm2549, %v2522, %v2295
        %v2557 = vsel %vm2549, %v2524, %v2297
        %v2559 = vsel %vm2549, %v2526, %v2299
        %v2561 = vsel %vm2549, %v2528, %v2301
        %v2563 = vsel %vm2549, %v2530, %v2303
        %v2565 = vsel %vm2549, %v2532, %v2305
        %v2567 = vsel %vm2549, %v2534, %v2307
        %v2569 = vsel %vm2549, %v2536, %v2309
        %v2571 = vsel %vm2549, %v2538, %v2311
        %v2573 = vsel %vm2549, %v2540, %v2313
        %v2575 = vsel %vm2549, %v2542, %v2315
        %v2577 = vsel %vm2549, %v2544, %v2317
        %v2579 = vsel %vm2549, %v2546, %v2319
        %v2581 = vsel %vm2549, %v2548, %v2321
        %v2591 = vunpack.c.l.b16 %v1609
        %v2592 = vunpack.c.l.b16 %v1610
        %v2593 = vunpack.c.l.b16 %v1611
        %v2594 = vunpack.c.l.b16 %v1612
        %v2595 = vunpack.c.l.b16 %v1613
        %v2596 = vunpack.c.l.b16 %v1614
        %v2597 = vunpack.c.l.b16 %v1615
        %v2598 = vunpack.c.l.b16 %v1616
        %v2599 = vunpack.c.l.b16 %v1617
        %v2600 = vpack.c.b16 %v2592, %v2591
        %v2601 = vpack.c.b16 %v2594, %v2593
        %v2602 = vpack.c.b16 %v2596, %v2595
        %v2603 = vpack.c.b16 %v2598, %v2597
        %v2604 = vpack.c.b16 %v2599, %v2599
        %vm2609 = vcmask 588800
        %v2610 = vsel %vm2609, %v2551, 0
        %v2612 = vsel %vm2609, %v2553, 0
        %v2614 = vsel %vm2609, %v2555, 0
        %v2616 = vsel %vm2609, %v2557, 0
        %v2618 = vsel %vm2609, %v2559, 0
        %v2620 = vsel %vm2609, %v2561, 0
        %v2622 = vsel %vm2609, %v2563, 0
        %v2624 = vsel %vm2609, %v2565, 0
        %v2626 = vsel %vm2609, %v2567, 0
        %v2628 = vsel %vm2609, %v2569, 0
        %v2630 = vsel %vm2609, %v2571, 0
        %v2632 = vsel %vm2609, %v2573, 0
        %v2634 = vsel %vm2609, %v2575, 0
        %v2636 = vsel %vm2609, %v2577, 0
        %v2638 = vsel %vm2609, %v2579, 0
        %v2640 = vsel %vm2609, %v2581, 0
        %vm2642 = vcmask 1043456
        %v2644 = vsel %vm2642, %v2604, 0
        %2646 = vmatprep.subr.bf16.mxu0 0
        %2647 = vmatpush1.bf16.msra.mxu0 %v2600
        %2648 = vmatprep.subr.bf16.mxu0 0
        %2649 = vmatpush1.bf16.msra.mxu0 %v2601
        %2650 = vmatprep.subr.bf16.mxu0 0
        %2651 = vmatpush1.bf16.msra.mxu0 %v2602
        %2652 = vmatprep.subr.bf16.mxu0 0
        %2653 = vmatpush1.bf16.msra.mxu0 %v2603
        %2654 = vmatprep.subr.bf16.mxu0 0
        %2655 = vmatpush1.bf16.msra.mxu0 %v2644
        %2656 = vmatprep.subr.bf16.mxu0 0
        %2657 = vmatpush1.bf16.msra.mxu0 0
        %2658 = vmatprep.subr.bf16.mxu0 0
        %2659 = vmatpush1.bf16.msra.mxu0 0
        %2660 = vmatprep.subr.bf16.mxu0 0
        %2661 = vmatpush1.bf16.msra.mxu0 0
        %2662 = vmatprep.subr.bf16.mxu0 0
        %2663 = vmatpush1.bf16.msra.mxu0 0
        %2664 = vmatprep.subr.bf16.mxu0 0
        %2665 = vmatpush1.bf16.msra.mxu0 0
        %2666 = vmatprep.subr.bf16.mxu0 0
        %2667 = vmatpush1.bf16.msra.mxu0 0
        %2668 = vmatprep.subr.bf16.mxu0 0
        %2669 = vmatpush1.bf16.msra.mxu0 0
        %2670 = vmatprep.subr.bf16.mxu0 0
        %2671 = vmatpush1.bf16.msra.mxu0 0
        %2672 = vmatprep.subr.bf16.mxu0 0
        %2673 = vmatpush1.bf16.msra.mxu0 0
        %2674 = vmatprep.subr.bf16.mxu0 0
        %2675 = vmatpush1.bf16.msra.mxu0 0
        %2676 = vmatprep.subr.bf16.mxu0 0
        %2677 = vmatpush1.bf16.msra.mxu0 0
        %2678 = vmatprep.mubr.bf16.mxu0 0
        %2679 = vmatmul.mubr.bf16.gmra.mrb[0].mxu0 %v2610
        %v2680 = vpop.f32.mrb[0].mxu0
        %v2681 = vadd.f32 0.0, %v2680
        %v2682 = vpop.f32.mrb[0].mxu0
        %v2683 = vpop.f32.mrb[0].mxu0
        %v2684 = vadd.f32 0.0, %v2683
        %v2685 = vpop.f32.mrb[0].mxu0
        %2686 = vmatprep.mubr.bf16.mxu0 0
        %2687 = vmatmul.mubr.bf16.gmra.mrb[0].mxu0 %v2612
        %v2688 = vpop.f32.mrb[0].mxu0
        %v2689 = vadd.f32 0.0, %v2688
        %v2690 = vpop.f32.mrb[0].mxu0
        %v2691 = vpop.f32.mrb[0].mxu0
        %v2692 = vadd.f32 0.0, %v2691
        %v2693 = vpop.f32.mrb[0].mxu0
        %2694 = vmatprep.mubr.bf16.mxu0 0
        %2695 = vmatmul.mubr.bf16.gmra.mrb[0].mxu0 %v2614
        %v2696 = vpop.f32.mrb[0].mxu0
        %v2697 = vadd.f32 0.0, %v2696
        %v2698 = vpop.f32.mrb[0].mxu0
        %v2699 = vpop.f32.mrb[0].mxu0
        %v2700 = vadd.f32 0.0, %v2699
        %v2701 = vpop.f32.mrb[0].mxu0
        %2702 = vmatprep.mubr.bf16.mxu0 0
        %2703 = vmatmul.mubr.bf16.gmra.mrb[0].mxu0 %v2616
        %v2704 = vpop.f32.mrb[0].mxu0
        %v2705 = vadd.f32 0.0, %v2704
        %v2706 = vpop.f32.mrb[0].mxu0
        %v2707 = vpop.f32.mrb[0].mxu0
        %v2708 = vadd.f32 0.0, %v2707
        %v2709 = vpop.f32.mrb[0].mxu0
        %2710 = vmatprep.mubr.bf16.mxu0 0
        %2711 = vmatmul.mubr.bf16.gmra.mrb[0].mxu0 %v2618
        %v2712 = vpop.f32.mrb[0].mxu0
        %v2713 = vadd.f32 0.0, %v2712
        %v2714 = vpop.f32.mrb[0].mxu0
        %v2715 = vpop.f32.mrb[0].mxu0
        %v2716 = vadd.f32 0.0, %v2715
        %v2717 = vpop.f32.mrb[0].mxu0
        %2718 = vmatprep.mubr.bf16.mxu0 0
        %2719 = vmatmul.mubr.bf16.gmra.mrb[0].mxu0 %v2620
        %v2720 = vpop.f32.mrb[0].mxu0
        %v2721 = vadd.f32 0.0, %v2720
        %v2722 = vpop.f32.mrb[0].mxu0
        %v2723 = vpop.f32.mrb[0].mxu0
        %v2724 = vadd.f32 0.0, %v2723
        %v2725 = vpop.f32.mrb[0].mxu0
        %2726 = vmatprep.mubr.bf16.mxu0 0
        %2727 = vmatmul.mubr.bf16.gmra.mrb[0].mxu0 %v2622
        %v2728 = vpop.f32.mrb[0].mxu0
        %v2729 = vadd.f32 0.0, %v2728
        %v2730 = vpop.f32.mrb[0].mxu0
        %v2731 = vpop.f32.mrb[0].mxu0
        %v2732 = vadd.f32 0.0, %v2731
        %v2733 = vpop.f32.mrb[0].mxu0
        %2734 = vmatprep.mubr.bf16.mxu0 0
        %2735 = vmatmul.mubr.bf16.gmra.mrb[0].mxu0 %v2624
        %v2736 = vpop.f32.mrb[0].mxu0
        %v2737 = vadd.f32 0.0, %v2736
        %v2738 = vpop.f32.mrb[0].mxu0
        %v2739 = vpop.f32.mrb[0].mxu0
        %v2740 = vadd.f32 0.0, %v2739
        %v2741 = vpop.f32.mrb[0].mxu0
        %2742 = vmatprep.mubr.bf16.mxu0 0
        %2743 = vmatmul.mubr.bf16.gmra.mrb[0].mxu0 %v2626
        %v2744 = vpop.f32.mrb[0].mxu0
        %v2745 = vadd.f32 0.0, %v2744
        %v2746 = vpop.f32.mrb[0].mxu0
        %v2747 = vpop.f32.mrb[0].mxu0
        %v2748 = vadd.f32 0.0, %v2747
        %v2749 = vpop.f32.mrb[0].mxu0
        %2750 = vmatprep.mubr.bf16.mxu0 0
        %2751 = vmatmul.mubr.bf16.gmra.mrb[0].mxu0 %v2628
        %v2752 = vpop.f32.mrb[0].mxu0
        %v2753 = vadd.f32 0.0, %v2752
        %v2754 = vpop.f32.mrb[0].mxu0
        %v2755 = vpop.f32.mrb[0].mxu0
        %v2756 = vadd.f32 0.0, %v2755
        %v2757 = vpop.f32.mrb[0].mxu0
        %2758 = vmatprep.mubr.bf16.mxu0 0
        %2759 = vmatmul.mubr.bf16.gmra.mrb[0].mxu0 %v2630
        %v2760 = vpop.f32.mrb[0].mxu0
        %v2761 = vadd.f32 0.0, %v2760
        %v2762 = vpop.f32.mrb[0].mxu0
        %v2763 = vpop.f32.mrb[0].mxu0
        %v2764 = vadd.f32 0.0, %v2763
        %v2765 = vpop.f32.mrb[0].mxu0
        %2766 = vmatprep.mubr.bf16.mxu0 0
        %2767 = vmatmul.mubr.bf16.gmra.mrb[0].mxu0 %v2632
        %v2768 = vpop.f32.mrb[0].mxu0
        %v2769 = vadd.f32 0.0, %v2768
        %v2770 = vpop.f32.mrb[0].mxu0
        %v2771 = vpop.f32.mrb[0].mxu0
        %v2772 = vadd.f32 0.0, %v2771
        %v2773 = vpop.f32.mrb[0].mxu0
        %2774 = vmatprep.mubr.bf16.mxu0 0
        %2775 = vmatmul.mubr.bf16.gmra.mrb[0].mxu0 %v2634
        %v2776 = vpop.f32.mrb[0].mxu0
        %v2777 = vadd.f32 0.0, %v2776
        %v2778 = vpop.f32.mrb[0].mxu0
        %v2779 = vpop.f32.mrb[0].mxu0
        %v2780 = vadd.f32 0.0, %v2779
        %v2781 = vpop.f32.mrb[0].mxu0
        %2782 = vmatprep.mubr.bf16.mxu0 0
        %2783 = vmatmul.mubr.bf16.gmra.mrb[0].mxu0 %v2636
        %v2784 = vpop.f32.mrb[0].mxu0
        %v2785 = vadd.f32 0.0, %v2784
        %v2786 = vpop.f32.mrb[0].mxu0
        %v2787 = vpop.f32.mrb[0].mxu0
        %v2788 = vadd.f32 0.0, %v2787
        %v2789 = vpop.f32.mrb[0].mxu0
        %2790 = vmatprep.mubr.bf16.mxu0 0
        %2791 = vmatmul.mubr.bf16.gmra.mrb[0].mxu0 %v2638
        %v2792 = vpop.f32.mrb[0].mxu0
        %v2793 = vadd.f32 0.0, %v2792
        %v2794 = vpop.f32.mrb[0].mxu0
        %v2795 = vpop.f32.mrb[0].mxu0
        %v2796 = vadd.f32 0.0, %v2795
        %v2797 = vpop.f32.mrb[0].mxu0
        %2798 = vmatprep.mubr.bf16.mxu0 0
        %2799 = vmatmul.mubr.bf16.gmra.mrb[0].mxu0 %v2640
        %v2800 = vpop.f32.mrb[0].mxu0
        %v2801 = vadd.f32 0.0, %v2800
        %v2802 = vpop.f32.mrb[0].mxu0
        %v2803 = vpop.f32.mrb[0].mxu0
        %v2804 = vadd.f32 0.0, %v2803
        %v2805 = vpop.f32.mrb[0].mxu0
        %2806 = vdwg.mxu0
        %v2807 = vsel %vm1110, %v2681, 0.0
        %v2808 = vsel %vm1110, %v2689, 0.0
        %v2809 = vadd.f32 %v2807, %v2808
        %v2810 = vsel %vm1110, %v2697, 0.0
        %v2811 = vadd.f32 %v2809, %v2810
        %v2812 = vsel %vm1110, %v2705, 0.0
        %v2813 = vadd.f32 %v2811, %v2812
        %v2814 = vsel %vm1110, %v2713, 0.0
        %v2815 = vadd.f32 %v2813, %v2814
        %v2816 = vsel %vm1110, %v2721, 0.0
        %v2817 = vadd.f32 %v2815, %v2816
        %v2818 = vsel %vm1110, %v2729, 0.0
        %v2819 = vadd.f32 %v2817, %v2818
        %v2820 = vsel %vm1110, %v2737, 0.0
        %v2821 = vadd.f32 %v2819, %v2820
        %v2822 = vsel %vm1110, %v2745, 0.0
        %v2823 = vadd.f32 %v2821, %v2822
        %v2824 = vsel %vm1110, %v2753, 0.0
        %v2825 = vadd.f32 %v2823, %v2824
        %v2826 = vsel %vm1110, %v2761, 0.0
        %v2827 = vadd.f32 %v2825, %v2826
        %v2828 = vsel %vm1110, %v2769, 0.0
        %v2829 = vadd.f32 %v2827, %v2828
        %v2830 = vsel %vm1110, %v2777, 0.0
        %v2831 = vadd.f32 %v2829, %v2830
        %v2832 = vsel %vm1110, %v2785, 0.0
        %v2833 = vadd.f32 %v2831, %v2832
        %v2834 = vsel %vm1110, %v2793, 0.0
        %v2835 = vadd.f32 %v2833, %v2834
        %v2836 = vsel %vm1110, %v2801, 0.0
        %v2837 = vadd.f32 %v2835, %v2836
        %v2838 = vsel %vm1110, %v2684, 0.0
        %v2839 = vsel %vm1110, %v2692, 0.0
        %v2840 = vadd.f32 %v2838, %v2839
        %v2841 = vsel %vm1110, %v2700, 0.0
        %v2842 = vadd.f32 %v2840, %v2841
        %v2843 = vsel %vm1110, %v2708, 0.0
        %v2844 = vadd.f32 %v2842, %v2843
        %v2845 = vsel %vm1110, %v2716, 0.0
        %v2846 = vadd.f32 %v2844, %v2845
        %v2847 = vsel %vm1110, %v2724, 0.0
        %v2848 = vadd.f32 %v2846, %v2847
        %v2849 = vsel %vm1110, %v2732, 0.0
        %v2850 = vadd.f32 %v2848, %v2849
        %v2851 = vsel %vm1110, %v2740, 0.0
        %v2852 = vadd.f32 %v2850, %v2851
        %v2853 = vsel %vm1110, %v2748, 0.0
        %v2854 = vadd.f32 %v2852, %v2853
        %v2855 = vsel %vm1110, %v2756, 0.0
        %v2856 = vadd.f32 %v2854, %v2855
        %v2857 = vsel %vm1110, %v2764, 0.0
        %v2858 = vadd.f32 %v2856, %v2857
        %v2859 = vsel %vm1110, %v2772, 0.0
        %v2860 = vadd.f32 %v2858, %v2859
        %v2861 = vsel %vm1110, %v2780, 0.0
        %v2862 = vadd.f32 %v2860, %v2861
        %v2863 = vsel %vm1110, %v2788, 0.0
        %v2864 = vadd.f32 %v2862, %v2863
        %v2865 = vsel %vm1110, %v2796, 0.0
        %v2866 = vadd.f32 %v2864, %v2865
        %v2867 = vsel %vm1110, %v2804, 0.0
        %v2868 = vadd.f32 %v2866, %v2867
        %v2869 = vsel %vm1110, %v2837, 0.0
        %v2870 = vsel %vm1110, %v2868, 0.0
        %v2871 = vadd.f32 %v2869, %v2870
        %v2872 = vrot.slane %v2871, 4
        %v2873 = vadd.f32 %v2871, %v2872
        %v2874 = vrot.slane %v2873, 2
        %v2875 = vadd.f32 %v2873, %v2874
        %v2876 = vrot.slane %v2875, 1
        %v2877 = vadd.f32 %v2875, %v2876
        %v2878 = vmul.f32 %v2877, 0.00390625
        %v2879 = vld [vmem:[%s4] sm:$0x1]
        %v2880 = vadd.f32 %v2878, %v2879
        %vm2881 = vcmask 57344
        %2882 = vst.msk [vmem:[%s216] sm:$0x1] %vm2881, %v2880
        %s2883 = sand.u32 %s137, 1
        %s2884 = scalar_lea.sflag [#allocation3], %s2883
        %s2885 = sand.u32 %s137, 1
        %s2886 = scalar_lea.vmem [#allocation2], %s2885
        // Predicated region
        $region41: #{tpu_custom_call.1} parent=39 // pred_check
          %p2887 = pneg %p147
        $region42: #{tpu_custom_call.1} parent=39 // pred_check_branch
          %2889 = sbr.rel (%p2887) target = $region44
        $region43: #{tpu_custom_call.1} parent=39 // pred_region
          %s2891 = ssub.s32 16, 16
          %2892 = vsyncadd %s2884, %s2891
          %s2893 = smul.addr %s19, 16
          %s2894 = scalar_lea.hbm %s5, %s2893
          %s2896 = sshll.u32 %s2886, 4
          %s2897 = int_to_ptr.vmem [resolvable:$true] %s2896
          %2899 = dma.vmem_to_hbm [thread:$0]  %s2897, 16, %s2894, %s2884
        $region44: #{tpu_custom_call.1} parent=39 // pred_fallthru
          _
      $region40: #{tpu_custom_call.1} parent=5 // pred_fallthru
        _
      %p2900 = scmp.le.s32.totalorder 2, %s14
      // Predicated region
      $region45: #{tpu_custom_call.1} parent=5 // pred_check
        %p2901 = pneg %p2900
      $region46: #{tpu_custom_call.1} parent=5 // pred_check_branch
        %2903 = sbr.rel (%p2901) target = $region48
      $region47: #{tpu_custom_call.1} parent=5 // pred_region
        %s2904 = ssub.s32 %s14, 2
        // Predicated region
        $region49: #{tpu_custom_call.1} parent=47 // pred_check
          %p2905 = pneg %p153
        $region50: #{tpu_custom_call.1} parent=47 // pred_check_branch
          %2907 = sbr.rel (%p2905) target = $region52
        $region51: #{tpu_custom_call.1} parent=47 // pred_region
          %s2908 = sand.u32 %s138, 1
          %s2909 = scalar_lea.sflag [#allocation3], %s2908
          %s2910 = sand.u32 %s138, 1
          %s2911 = scalar_lea.vmem [#allocation2], %s2910
          %2912 = dma.done %s2909, 16
        $region52: #{tpu_custom_call.1} parent=47 // pred_fallthru
          _
      $region48: #{tpu_custom_call.1} parent=5 // pred_fallthru
        _
    $region6: #{tpu_custom_call.1} parent=1 // loop_footer
      %s18 = sadd.s32 1, %s14
    $region7: #{tpu_custom_call.1} parent=1 // loop_footer_branch
      %13 = sbr.rel target = $region3
    $region8: #{tpu_custom_call.1} parent=1 // loop_exit
      _
    %2913 = vsyncpa [#allocation3], 1
    %s2914 = scalar_lea.sflag [#allocation3], 1
    %2915 = vsyncpa %s2914, 1

</llo_original>
